<compile_context>
chip_gen: v7x
topology: tpu7x:2x2x1
jax: 0.10.0
libtpu: 0.0.40
codegen_flags: <defaults>
</compile_context>

<pallas_src>
import functools

import jax
import jax.numpy as jnp
from jax.experimental import pallas as pl
from jax.experimental.pallas import tpu as pltpu


def _transformer_layer_kernel(
    x_ref, pos_ref, wqkv_ref, bqkv_ref, wo_ref, w1_ref, b1_ref, w2_ref, vecs_ref,
    o_ref, *, n_head, eps,
):
    B, S, E = x_ref.shape
    hd = E // n_head
    scale = 1.0 / (hd ** 0.5)

    x = x_ref[...]                               # (B, S, E) f32
    qk = x + pos_ref[...]                        # pos (1, S, E): batch broadcast in-register
    x2 = x.reshape(B * S, E)                     # leading-dim merge (lane dim preserved)
    x_bf = x2.astype(jnp.bfloat16)
    qk_bf = qk.reshape(B * S, E).astype(jnp.bfloat16)

    vecs = vecs_ref[...]                         # (8, E) packed bias / LayerNorm vectors
    bo, g1, be1, b2, g2, be2 = (vecs[i:i + 1, :] for i in range(6))

    # ---- Multi-head self-attention -----------------------------------------
    # Heads live on a leading (non-lane) axis of the pre-split weights, so each
    # head's q/k/v comes straight out of its own MXU matmul (no lane slicing of
    # live activations).  Head-concat + out-proj are folded into a per-head
    # accumulation: concat(o_h) @ Wo^T == sum_h o_h @ Wo^T[h*hd:(h+1)*hd, :],
    # reading only the (hd, E) slice wo_ref[h] each iteration.
    attn = jnp.zeros((B * S, E), jnp.float32) + bo
    for h in range(n_head):
        qh = jnp.dot(qk_bf, wqkv_ref[0, h],
                     preferred_element_type=jnp.float32) + bqkv_ref[0, h]
        kh = jnp.dot(qk_bf, wqkv_ref[1, h],
                     preferred_element_type=jnp.float32) + bqkv_ref[1, h]
        vh = jnp.dot(x_bf, wqkv_ref[2, h],
                     preferred_element_type=jnp.float32) + bqkv_ref[2, h]
        qh3 = qh.reshape(B, S, hd).astype(jnp.bfloat16)
        kh3 = kh.reshape(B, S, hd).astype(jnp.bfloat16)
        vh3 = vh.reshape(B, S, hd).astype(jnp.bfloat16)

        logits = jnp.einsum("bqd,bkd->bqk", qh3, kh3,
                            preferred_element_type=jnp.float32) * scale
        m = jnp.max(logits, axis=-1, keepdims=True)
        p = jnp.exp(logits - m)                  # softmax kept in f32
        p = p * pl.reciprocal(jnp.sum(p, axis=-1, keepdims=True), approx=True)
        oh = jnp.einsum("bqk,bkd->bqd", p.astype(jnp.bfloat16), vh3,
                        preferred_element_type=jnp.float32)           # (B, S, hd)
        attn = attn + jnp.dot(oh.reshape(B * S, hd).astype(jnp.bfloat16),
                              wo_ref[h], preferred_element_type=jnp.float32)

    # ---- Residual + LayerNorm1 (dropout == identity in eval mode) ----------
    y = x2 + attn
    mu = jnp.mean(y, axis=-1, keepdims=True)
    var = jnp.mean(jnp.square(y - mu), axis=-1, keepdims=True)
    y = (y - mu) * jax.lax.rsqrt(var + eps) * g1 + be1

    # ---- Feed-forward: Linear1 -> ReLU -> Linear2 (bf16 operands, f32 acc) --
    hid = jnp.dot(y.astype(jnp.bfloat16), w1_ref[...],
                  preferred_element_type=jnp.float32) + b1_ref[...]
    hid = jnp.maximum(hid, 0.0)
    f = jnp.dot(hid.astype(jnp.bfloat16), w2_ref[...],
                preferred_element_type=jnp.float32) + b2

    # ---- Residual + LayerNorm2 ----------------------------------------------
    z = f + y
    mu2 = jnp.mean(z, axis=-1, keepdims=True)
    var2 = jnp.mean(jnp.square(z - mu2), axis=-1, keepdims=True)
    z = (z - mu2) * jax.lax.rsqrt(var2 + eps) * g2 + be2

    o_ref[...] = z                               # (B*S, E): single full-block store


def prepare_params(params, *, n_head):
    """One-time weight preparation (transpose / per-head split / bf16 cast / packing).

    Call once and cache the result; none of this layout plumbing is paid per
    forward call.
    """
    E = params["out_proj_weight"].shape[0]
    F = params["lin1_weight"].shape[0]
    hd = E // n_head
    Wi = params["in_proj_weight"].astype(jnp.float32)        # (3E, E) torch layout
    bi = params["in_proj_bias"].astype(jnp.float32)          # (3E,)

    # (3, H, E, hd): per-head input-projection weights, ready for `x @ w`.
    wqkv = jnp.transpose(Wi.reshape(3, n_head, hd, E), (0, 1, 3, 2)).astype(jnp.bfloat16)
    bqkv = bi.reshape(3, n_head, 1, hd)                      # f32 biases
    # out_proj folded per head: concat(o_h) @ Wo^T == sum_h o_h @ Wo^T[h*hd:(h+1)*hd]
    wo_h = params["out_proj_weight"].T.reshape(n_head, hd, E).astype(jnp.bfloat16)
    w1 = params["lin1_weight"].T.astype(jnp.bfloat16)        # (E, F)
    w2 = params["lin2_weight"].T.astype(jnp.bfloat16)        # (F, E)
    b1 = params["lin1_bias"].reshape(1, F).astype(jnp.float32)

    # Pack the six E-sized bias / LayerNorm vectors into one (8, E) slab -> 1 DMA.
    vecs = jnp.zeros((8, E), jnp.float32)
    for i, name in enumerate(["out_proj_bias", "ln1_weight", "ln1_bias",
                              "lin2_bias", "ln2_weight", "ln2_bias"]):
        vecs = vecs.at[i].set(params[name].astype(jnp.float32))

    return dict(wqkv=wqkv, bqkv=bqkv, wo_h=wo_h, w1=w1, w2=w2, b1=b1, vecs=vecs)


def transformer_layer(inputs, pos, prepared, *, n_head, eps=1e-5):
    """Fused Pallas implementation of TransformerLayer.forward (eval mode).

    inputs: (S, B, E) float32, seq-first like nn.MultiheadAttention.
    pos:    (S, E) positional table (batch broadcast fused in-kernel) or (S, B, E).
    prepared: output of prepare_params() (cached, pre-transposed bf16 weights).
    returns (S, B, E) float32.
    """
    S, B, E = inputs.shape
    assert E % n_head == 0
    F = prepared["w1"].shape[1]

    x_b = jnp.swapaxes(inputs, 0, 1)             # (B, S, E)
    if pos.ndim == 2:
        pos_b = pos[None]                        # (1, S, E): broadcast fused in-kernel
    else:
        pos_b = jnp.swapaxes(pos, 0, 1)          # (B, S, E)

    args = (x_b.astype(jnp.float32), pos_b.astype(jnp.float32),
            prepared["wqkv"], prepared["bqkv"], prepared["wo_h"],
            prepared["w1"], prepared["b1"], prepared["w2"], prepared["vecs"])

    flops = int(2 * B * S * E * (4 * E + 2 * F) + 4 * B * S * S * E)
    transcendentals = int(n_head * B * S * S + n_head * B * S + 2 * B * S)
    bytes_accessed = int(sum(int(a.size) * a.dtype.itemsize for a in args)
                         + B * S * E * 4)

    kernel = functools.partial(_transformer_layer_kernel, n_head=n_head, eps=eps)
    out2d = pl.pallas_call(
        kernel,
        out_shape=jax.ShapeDtypeStruct((B * S, E), jnp.float32),
        # No grid at these demo sizes: the whole layer runs as one invocation on
        # full-array VMEM blocks (weights + activations fit easily).
        # TODO(synk): at real sizes add a 1-D grid over S tiles with resident
        #             weight BlockSpecs (index_map -> 0), mark the S-tile axis
        #             "parallel" (v7x: 2 TensorCores) and set vmem_limit_bytes.
        in_specs=[pl.BlockSpec(memory_space=pltpu.MemorySpace.VMEM)] * len(args),
        out_specs=pl.BlockSpec(memory_space=pltpu.MemorySpace.VMEM),
        cost_estimate=pl.CostEstimate(flops=flops, transcendentals=transcendentals,
                                      bytes_accessed=bytes_accessed),
    )(*args)

    return jnp.swapaxes(out2d.reshape(B, S, E), 0, 1)   # back to (S, B, E)


# ---------------------------------------------------------------------------
# Pure-JAX reference of the PyTorch forward (eval mode), for correctness check.
# ---------------------------------------------------------------------------
def _layer_norm_ref(x, gamma, beta, eps):
    mu = jnp.mean(x, axis=-1, keepdims=True)
    var = jnp.mean(jnp.square(x - mu), axis=-1, keepdims=True)
    return (x - mu) * jax.lax.rsqrt(var + eps) * gamma + beta


def reference_forward(inputs, pos, params, *, n_head, eps=1e-5):
    S, B, E = inputs.shape
    hd = E // n_head
    pos3 = jnp.broadcast_to(pos[:, None, :], (S, B, E)) if pos.ndim == 2 else pos
    q_in = inputs + pos3
    Wi, bi = params["in_proj_weight"], params["in_proj_bias"]
    q = q_in @ Wi[:E].T + bi[:E]
    k = q_in @ Wi[E:2 * E].T + bi[E:2 * E]
    v = inputs @ Wi[2 * E:].T + bi[2 * E:]

    def heads(t):  # (S, B, E) -> (B, H, S, hd)
        return t.reshape(S, B, n_head, hd).transpose(1, 2, 0, 3)

    qh, kh, vh = heads(q), heads(k), heads(v)
    logits = jnp.einsum("bhqd,bhkd->bhqk", qh, kh) / (hd ** 0.5)
    p = jax.nn.softmax(logits, axis=-1)
    o = jnp.einsum("bhqk,bhkd->bhqd", p, vh)
    o = o.transpose(2, 0, 1, 3).reshape(S, B, E)
    attn = o @ params["out_proj_weight"].T + params["out_proj_bias"]
    y = _layer_norm_ref(inputs + attn, params["ln1_weight"], params["ln1_bias"], eps)
    f = jax.nn.relu(y @ params["lin1_weight"].T + params["lin1_bias"])
    f = f @ params["lin2_weight"].T + params["lin2_bias"]
    return _layer_norm_ref(f + y, params["ln2_weight"], params["ln2_bias"], eps)


def init_params(key, d_model, dim_forward):
    ks = jax.random.split(key, 12)

    def rnd(k, shape, scale=0.1):
        return (scale * jax.random.normal(k, shape)).astype(jnp.float32)

    return dict(
        in_proj_weight=rnd(ks[0], (3 * d_model, d_model)),
        in_proj_bias=rnd(ks[1], (3 * d_model,)),
        out_proj_weight=rnd(ks[2], (d_model, d_model)),
        out_proj_bias=rnd(ks[3], (d_model,)),
        lin1_weight=rnd(ks[4], (dim_forward, d_model)),
        lin1_bias=rnd(ks[5], (dim_forward,)),
        lin2_weight=rnd(ks[6], (d_model, dim_forward)),
        lin2_bias=rnd(ks[7], (d_model,)),
        ln1_weight=1.0 + rnd(ks[8], (d_model,)),
        ln1_bias=rnd(ks[9], (d_model,)),
        ln2_weight=1.0 + rnd(ks[10], (d_model,)),
        ln2_bias=rnd(ks[11], (d_model,)),
    )


if __name__ == "__main__":
    # Small shapes consistent with the module: seq=8, batch=2, d_model=32,
    # n_head=4, dim_forward=64 (constructor arg; kept small for the demo).
    d_model, n_head, dim_forward = 32, 4, 64
    S, B = 8, 2

    key = jax.random.PRNGKey(0)
    k_params, k_x, k_pos = jax.random.split(key, 3)

    params = init_params(k_params, d_model, dim_forward)
    inputs = jax.random.normal(k_x, (S, B, d_model), dtype=jnp.float32)
    # Positional-embedding table (S, E): its batch broadcast is fused in-kernel.
    pos_table = 0.1 * jax.random.normal(k_pos, (S, d_model), dtype=jnp.float32)

    prepared = prepare_params(params, n_head=n_head)   # one-time weight prep (cached)
    out = transformer_layer(inputs, pos_table, prepared, n_head=n_head)
    out = jax.block_until_ready(out)

    with jax.default_matmul_precision("highest"):
        ref = reference_forward(inputs, pos_table, params, n_head=n_head)

    assert out.shape == (S, B, d_model)
    assert out.dtype == jnp.float32
    # The kernel runs its matmuls with bf16 operands (f32 accumulation) while the
    # reference uses "highest" precision, so allow a modest tolerance; observed
    # max-abs differences are well below this.
    max_err = float(jnp.max(jnp.abs(out - ref)))
    assert max_err < 5e-2, f"max abs error {max_err}"

    print("KERNEL_OK")
</pallas_src>

<mosaic_0001>
module attributes {stable_mosaic.version = 11 : i64} {
  func.func @_transformer_layer_kernel(%arg0: memref<2x8x32xf32, #tpu.memory_space<vmem>>, %arg1: memref<1x8x32xf32, #tpu.memory_space<vmem>>, %arg2: memref<3x4x32x8xbf16, #tpu.memory_space<vmem>>, %arg3: memref<3x4x1x8xf32, #tpu.memory_space<vmem>>, %arg4: memref<4x8x32xbf16, #tpu.memory_space<vmem>>, %arg5: memref<32x64xbf16, #tpu.memory_space<vmem>>, %arg6: memref<1x64xf32, #tpu.memory_space<vmem>>, %arg7: memref<64x32xbf16, #tpu.memory_space<vmem>>, %arg8: memref<8x32xf32, #tpu.memory_space<vmem>>, %arg9: memref<16x32xf32, #tpu.memory_space<vmem>>) attributes {dimension_semantics = [], scalar_prefetch = 0 : i64, scratch_operands = 0 : i64, tpu.core_type = #tpu.core_type<tc>} {
    %c0 = arith.constant 0 : index
    %c0_0 = arith.constant 0 : index
    %c0_1 = arith.constant 0 : index
    %0 = vector.load %arg0[%c0, %c0_0, %c0_1] : memref<2x8x32xf32, #tpu.memory_space<vmem>>, vector<2x8x32xf32>
    %c0_2 = arith.constant 0 : index
    %c0_3 = arith.constant 0 : index
    %c0_4 = arith.constant 0 : index
    %1 = vector.load %arg1[%c0_2, %c0_3, %c0_4] : memref<1x8x32xf32, #tpu.memory_space<vmem>>, vector<1x8x32xf32>
    %2 = vector.broadcast %1 : vector<1x8x32xf32> to vector<2x8x32xf32>
    %3 = arith.addf %0, %2 : vector<2x8x32xf32>
    %4 = vector.shape_cast %0 : vector<2x8x32xf32> to vector<16x32xf32>
    %5 = arith.truncf %4 : vector<16x32xf32> to vector<16x32xbf16>
    %6 = vector.shape_cast %3 : vector<2x8x32xf32> to vector<16x32xf32>
    %7 = arith.truncf %6 : vector<16x32xf32> to vector<16x32xbf16>
    %c0_5 = arith.constant 0 : index
    %c0_6 = arith.constant 0 : index
    %8 = vector.load %arg8[%c0_5, %c0_6] : memref<8x32xf32, #tpu.memory_space<vmem>>, vector<8x32xf32>
    %9 = vector.extract_strided_slice %8 {offsets = [0, 0], sizes = [1, 32], strides = [1, 1]} : vector<8x32xf32> to vector<1x32xf32>
    %10 = vector.extract_strided_slice %8 {offsets = [1, 0], sizes = [1, 32], strides = [1, 1]} : vector<8x32xf32> to vector<1x32xf32>
    %11 = vector.extract_strided_slice %8 {offsets = [2, 0], sizes = [1, 32], strides = [1, 1]} : vector<8x32xf32> to vector<1x32xf32>
    %12 = vector.extract_strided_slice %8 {offsets = [3, 0], sizes = [1, 32], strides = [1, 1]} : vector<8x32xf32> to vector<1x32xf32>
    %13 = vector.extract_strided_slice %8 {offsets = [4, 0], sizes = [1, 32], strides = [1, 1]} : vector<8x32xf32> to vector<1x32xf32>
    %14 = vector.extract_strided_slice %8 {offsets = [5, 0], sizes = [1, 32], strides = [1, 1]} : vector<8x32xf32> to vector<1x32xf32>
    %cst = arith.constant 0.000000e+00 : f32
    %15 = vector.broadcast %cst : f32 to vector<16x32xf32>
    %16 = vector.broadcast %9 : vector<1x32xf32> to vector<16x32xf32>
    %17 = arith.addf %15, %16 : vector<16x32xf32>
    %c0_7 = arith.constant 0 : index
    %c0_8 = arith.constant 0 : index
    %c0_9 = arith.constant 0 : index
    %c0_10 = arith.constant 0 : index
    %18 = vector.load %arg2[%c0_7, %c0_8, %c0_9, %c0_10] : memref<3x4x32x8xbf16, #tpu.memory_space<vmem>>, vector<1x1x32x8xbf16>
    %19 = vector.shape_cast %18 : vector<1x1x32x8xbf16> to vector<32x8xbf16>
    %cst_11 = arith.constant dense<0.000000e+00> : vector<16x8xf32>
    %20 = tpu.matmul %7, %19, %cst_11 {dimension_numbers = #tpu.dot_dimension_numbers<[1], [0], [0], [1], [0, 0, 1, 1], [], []>} : vector<16x32xbf16>, vector<32x8xbf16>, vector<16x8xf32> -> vector<16x8xf32>
    %c0_12 = arith.constant 0 : index
    %c0_13 = arith.constant 0 : index
    %c0_14 = arith.constant 0 : index
    %c0_15 = arith.constant 0 : index
    %21 = vector.load %arg3[%c0_12, %c0_13, %c0_14, %c0_15] : memref<3x4x1x8xf32, #tpu.memory_space<vmem>>, vector<1x1x1x8xf32>
    %22 = vector.shape_cast %21 : vector<1x1x1x8xf32> to vector<1x8xf32>
    %23 = vector.broadcast %22 : vector<1x8xf32> to vector<16x8xf32>
    %24 = arith.addf %20, %23 : vector<16x8xf32>
    %c1 = arith.constant 1 : index
    %c0_16 = arith.constant 0 : index
    %c0_17 = arith.constant 0 : index
    %c0_18 = arith.constant 0 : index
    %25 = vector.load %arg2[%c1, %c0_16, %c0_17, %c0_18] : memref<3x4x32x8xbf16, #tpu.memory_space<vmem>>, vector<1x1x32x8xbf16>
    %26 = vector.shape_cast %25 : vector<1x1x32x8xbf16> to vector<32x8xbf16>
    %cst_19 = arith.constant dense<0.000000e+00> : vector<16x8xf32>
    %27 = tpu.matmul %7, %26, %cst_19 {dimension_numbers = #tpu.dot_dimension_numbers<[1], [0], [0], [1], [0, 0, 1, 1], [], []>} : vector<16x32xbf16>, vector<32x8xbf16>, vector<16x8xf32> -> vector<16x8xf32>
    %c1_20 = arith.constant 1 : index
    %c0_21 = arith.constant 0 : index
    %c0_22 = arith.constant 0 : index
    %c0_23 = arith.constant 0 : index
    %28 = vector.load %arg3[%c1_20, %c0_21, %c0_22, %c0_23] : memref<3x4x1x8xf32, #tpu.memory_space<vmem>>, vector<1x1x1x8xf32>
    %29 = vector.shape_cast %28 : vector<1x1x1x8xf32> to vector<1x8xf32>
    %30 = vector.broadcast %29 : vector<1x8xf32> to vector<16x8xf32>
    %31 = arith.addf %27, %30 : vector<16x8xf32>
    %c2 = arith.constant 2 : index
    %c0_24 = arith.constant 0 : index
    %c0_25 = arith.constant 0 : index
    %c0_26 = arith.constant 0 : index
    %32 = vector.load %arg2[%c2, %c0_24, %c0_25, %c0_26] : memref<3x4x32x8xbf16, #tpu.memory_space<vmem>>, vector<1x1x32x8xbf16>
    %33 = vector.shape_cast %32 : vector<1x1x32x8xbf16> to vector<32x8xbf16>
    %cst_27 = arith.constant dense<0.000000e+00> : vector<16x8xf32>
    %34 = tpu.matmul %5, %33, %cst_27 {dimension_numbers = #tpu.dot_dimension_numbers<[1], [0], [0], [1], [0, 0, 1, 1], [], []>} : vector<16x32xbf16>, vector<32x8xbf16>, vector<16x8xf32> -> vector<16x8xf32>
    %c2_28 = arith.constant 2 : index
    %c0_29 = arith.constant 0 : index
    %c0_30 = arith.constant 0 : index
    %c0_31 = arith.constant 0 : index
    %35 = vector.load %arg3[%c2_28, %c0_29, %c0_30, %c0_31] : memref<3x4x1x8xf32, #tpu.memory_space<vmem>>, vector<1x1x1x8xf32>
    %36 = vector.shape_cast %35 : vector<1x1x1x8xf32> to vector<1x8xf32>
    %37 = vector.broadcast %36 : vector<1x8xf32> to vector<16x8xf32>
    %38 = arith.addf %34, %37 : vector<16x8xf32>
    %39 = vector.shape_cast %24 : vector<16x8xf32> to vector<2x8x8xf32>
    %40 = arith.truncf %39 : vector<2x8x8xf32> to vector<2x8x8xbf16>
    %41 = vector.shape_cast %31 : vector<16x8xf32> to vector<2x8x8xf32>
    %42 = arith.truncf %41 : vector<2x8x8xf32> to vector<2x8x8xbf16>
    %43 = vector.shape_cast %38 : vector<16x8xf32> to vector<2x8x8xf32>
    %44 = arith.truncf %43 : vector<2x8x8xf32> to vector<2x8x8xbf16>
    "tpu.trace_start"() <{level = 10 : i32, message = "bqd,bkd->bqk"}> : () -> ()
    %cst_32 = arith.constant dense<0.000000e+00> : vector<2x8x8xf32>
    %45 = tpu.matmul %40, %42, %cst_32 {dimension_numbers = #tpu.dot_dimension_numbers<[2], [2], [1], [1], [0, 0, 0, 1, 1, 1], [0], [0]>} : vector<2x8x8xbf16>, vector<2x8x8xbf16>, vector<2x8x8xf32> -> vector<2x8x8xf32>
    "tpu.trace_stop"() : () -> ()
    %cst_33 = arith.constant 0.353553385 : f32
    %46 = vector.broadcast %cst_33 : f32 to vector<2x8x8xf32>
    %47 = arith.mulf %45, %46 : vector<2x8x8xf32>
    %cst_34 = arith.constant dense<0xFF800000> : vector<2x8xf32>
    %48 = vector.multi_reduction <maximumf>, %47, %cst_34 [2] : vector<2x8x8xf32> to vector<2x8xf32>
    %49 = vector.shape_cast %48 : vector<2x8xf32> to vector<2x8x1xf32>
    %50 = vector.broadcast %49 : vector<2x8x1xf32> to vector<2x8x8xf32>
    %51 = arith.subf %47, %50 : vector<2x8x8xf32>
    %52 = math.exp %51 : vector<2x8x8xf32>
    %cst_35 = arith.constant dense<0.000000e+00> : vector<2x8xf32>
    %53 = vector.multi_reduction <add>, %52, %cst_35 [2] : vector<2x8x8xf32> to vector<2x8xf32>
    %54 = vector.shape_cast %53 : vector<2x8xf32> to vector<2x8x1xf32>
    %55 = tpu.reciprocal %54 {approx = true} : vector<2x8x1xf32> -> vector<2x8x1xf32>
    %56 = vector.broadcast %55 : vector<2x8x1xf32> to vector<2x8x8xf32>
    %57 = arith.mulf %52, %56 : vector<2x8x8xf32>
    %58 = arith.truncf %57 : vector<2x8x8xf32> to vector<2x8x8xbf16>
    "tpu.trace_start"() <{level = 10 : i32, message = "bqk,bkd->bqd"}> : () -> ()
    %cst_36 = arith.constant dense<0.000000e+00> : vector<2x8x8xf32>
    %59 = tpu.matmul %58, %44, %cst_36 {dimension_numbers = #tpu.dot_dimension_numbers<[2], [1], [1], [2], [0, 0, 0, 1, 1, 2], [0], [0]>} : vector<2x8x8xbf16>, vector<2x8x8xbf16>, vector<2x8x8xf32> -> vector<2x8x8xf32>
    "tpu.trace_stop"() : () -> ()
    %60 = vector.shape_cast %59 : vector<2x8x8xf32> to vector<16x8xf32>
    %61 = arith.truncf %60 : vector<16x8xf32> to vector<16x8xbf16>
    %c0_37 = arith.constant 0 : index
    %c0_38 = arith.constant 0 : index
    %c0_39 = arith.constant 0 : index
    %62 = vector.load %arg4[%c0_37, %c0_38, %c0_39] : memref<4x8x32xbf16, #tpu.memory_space<vmem>>, vector<1x8x32xbf16>
    %63 = vector.shape_cast %62 : vector<1x8x32xbf16> to vector<8x32xbf16>
    %cst_40 = arith.constant dense<0.000000e+00> : vector<16x32xf32>
    %64 = tpu.matmul %61, %63, %cst_40 {dimension_numbers = #tpu.dot_dimension_numbers<[1], [0], [0], [1], [0, 0, 1, 1], [], []>} : vector<16x8xbf16>, vector<8x32xbf16>, vector<16x32xf32> -> vector<16x32xf32>
    %65 = arith.addf %17, %64 : vector<16x32xf32>
    %c0_41 = arith.constant 0 : index
    %c1_42 = arith.constant 1 : index
    %c0_43 = arith.constant 0 : index
    %c0_44 = arith.constant 0 : index
    %66 = vector.load %arg2[%c0_41, %c1_42, %c0_43, %c0_44] : memref<3x4x32x8xbf16, #tpu.memory_space<vmem>>, vector<1x1x32x8xbf16>
    %67 = vector.shape_cast %66 : vector<1x1x32x8xbf16> to vector<32x8xbf16>
    %cst_45 = arith.constant dense<0.000000e+00> : vector<16x8xf32>
    %68 = tpu.matmul %7, %67, %cst_45 {dimension_numbers = #tpu.dot_dimension_numbers<[1], [0], [0], [1], [0, 0, 1, 1], [], []>} : vector<16x32xbf16>, vector<32x8xbf16>, vector<16x8xf32> -> vector<16x8xf32>
    %c0_46 = arith.constant 0 : index
    %c1_47 = arith.constant 1 : index
    %c0_48 = arith.constant 0 : index
    %c0_49 = arith.constant 0 : index
    %69 = vector.load %arg3[%c0_46, %c1_47, %c0_48, %c0_49] : memref<3x4x1x8xf32, #tpu.memory_space<vmem>>, vector<1x1x1x8xf32>
    %70 = vector.shape_cast %69 : vector<1x1x1x8xf32> to vector<1x8xf32>
    %71 = vector.broadcast %70 : vector<1x8xf32> to vector<16x8xf32>
    %72 = arith.addf %68, %71 : vector<16x8xf32>
    %c1_50 = arith.constant 1 : index
    %c1_51 = arith.constant 1 : index
    %c0_52 = arith.constant 0 : index
    %c0_53 = arith.constant 0 : index
    %73 = vector.load %arg2[%c1_50, %c1_51, %c0_52, %c0_53] : memref<3x4x32x8xbf16, #tpu.memory_space<vmem>>, vector<1x1x32x8xbf16>
    %74 = vector.shape_cast %73 : vector<1x1x32x8xbf16> to vector<32x8xbf16>
    %cst_54 = arith.constant dense<0.000000e+00> : vector<16x8xf32>
    %75 = tpu.matmul %7, %74, %cst_54 {dimension_numbers = #tpu.dot_dimension_numbers<[1], [0], [0], [1], [0, 0, 1, 1], [], []>} : vector<16x32xbf16>, vector<32x8xbf16>, vector<16x8xf32> -> vector<16x8xf32>
    %c1_55 = arith.constant 1 : index
    %c1_56 = arith.constant 1 : index
    %c0_57 = arith.constant 0 : index
    %c0_58 = arith.constant 0 : index
    %76 = vector.load %arg3[%c1_55, %c1_56, %c0_57, %c0_58] : memref<3x4x1x8xf32, #tpu.memory_space<vmem>>, vector<1x1x1x8xf32>
    %77 = vector.shape_cast %76 : vector<1x1x1x8xf32> to vector<1x8xf32>
    %78 = vector.broadcast %77 : vector<1x8xf32> to vector<16x8xf32>
    %79 = arith.addf %75, %78 : vector<16x8xf32>
    %c2_59 = arith.constant 2 : index
    %c1_60 = arith.constant 1 : index
    %c0_61 = arith.constant 0 : index
    %c0_62 = arith.constant 0 : index
    %80 = vector.load %arg2[%c2_59, %c1_60, %c0_61, %c0_62] : memref<3x4x32x8xbf16, #tpu.memory_space<vmem>>, vector<1x1x32x8xbf16>
    %81 = vector.shape_cast %80 : vector<1x1x32x8xbf16> to vector<32x8xbf16>
    %cst_63 = arith.constant dense<0.000000e+00> : vector<16x8xf32>
    %82 = tpu.matmul %5, %81, %cst_63 {dimension_numbers = #tpu.dot_dimension_numbers<[1], [0], [0], [1], [0, 0, 1, 1], [], []>} : vector<16x32xbf16>, vector<32x8xbf16>, vector<16x8xf32> -> vector<16x8xf32>
    %c2_64 = arith.constant 2 : index
    %c1_65 = arith.constant 1 : index
    %c0_66 = arith.constant 0 : index
    %c0_67 = arith.constant 0 : index
    %83 = vector.load %arg3[%c2_64, %c1_65, %c0_66, %c0_67] : memref<3x4x1x8xf32, #tpu.memory_space<vmem>>, vector<1x1x1x8xf32>
    %84 = vector.shape_cast %83 : vector<1x1x1x8xf32> to vector<1x8xf32>
    %85 = vector.broadcast %84 : vector<1x8xf32> to vector<16x8xf32>
    %86 = arith.addf %82, %85 : vector<16x8xf32>
    %87 = vector.shape_cast %72 : vector<16x8xf32> to vector<2x8x8xf32>
    %88 = arith.truncf %87 : vector<2x8x8xf32> to vector<2x8x8xbf16>
    %89 = vector.shape_cast %79 : vector<16x8xf32> to vector<2x8x8xf32>
    %90 = arith.truncf %89 : vector<2x8x8xf32> to vector<2x8x8xbf16>
    %91 = vector.shape_cast %86 : vector<16x8xf32> to vector<2x8x8xf32>
    %92 = arith.truncf %91 : vector<2x8x8xf32> to vector<2x8x8xbf16>
    "tpu.trace_start"() <{level = 10 : i32, message = "bqd,bkd->bqk"}> : () -> ()
    %cst_68 = arith.constant dense<0.000000e+00> : vector<2x8x8xf32>
    %93 = tpu.matmul %88, %90, %cst_68 {dimension_numbers = #tpu.dot_dimension_numbers<[2], [2], [1], [1], [0, 0, 0, 1, 1, 1], [0], [0]>} : vector<2x8x8xbf16>, vector<2x8x8xbf16>, vector<2x8x8xf32> -> vector<2x8x8xf32>
    "tpu.trace_stop"() : () -> ()
    %cst_69 = arith.constant 0.353553385 : f32
    %94 = vector.broadcast %cst_69 : f32 to vector<2x8x8xf32>
    %95 = arith.mulf %93, %94 : vector<2x8x8xf32>
    %cst_70 = arith.constant dense<0xFF800000> : vector<2x8xf32>
    %96 = vector.multi_reduction <maximumf>, %95, %cst_70 [2] : vector<2x8x8xf32> to vector<2x8xf32>
    %97 = vector.shape_cast %96 : vector<2x8xf32> to vector<2x8x1xf32>
    %98 = vector.broadcast %97 : vector<2x8x1xf32> to vector<2x8x8xf32>
    %99 = arith.subf %95, %98 : vector<2x8x8xf32>
    %100 = math.exp %99 : vector<2x8x8xf32>
    %cst_71 = arith.constant dense<0.000000e+00> : vector<2x8xf32>
    %101 = vector.multi_reduction <add>, %100, %cst_71 [2] : vector<2x8x8xf32> to vector<2x8xf32>
    %102 = vector.shape_cast %101 : vector<2x8xf32> to vector<2x8x1xf32>
    %103 = tpu.reciprocal %102 {approx = true} : vector<2x8x1xf32> -> vector<2x8x1xf32>
    %104 = vector.broadcast %103 : vector<2x8x1xf32> to vector<2x8x8xf32>
    %105 = arith.mulf %100, %104 : vector<2x8x8xf32>
    %106 = arith.truncf %105 : vector<2x8x8xf32> to vector<2x8x8xbf16>
    "tpu.trace_start"() <{level = 10 : i32, message = "bqk,bkd->bqd"}> : () -> ()
    %cst_72 = arith.constant dense<0.000000e+00> : vector<2x8x8xf32>
    %107 = tpu.matmul %106, %92, %cst_72 {dimension_numbers = #tpu.dot_dimension_numbers<[2], [1], [1], [2], [0, 0, 0, 1, 1, 2], [0], [0]>} : vector<2x8x8xbf16>, vector<2x8x8xbf16>, vector<2x8x8xf32> -> vector<2x8x8xf32>
    "tpu.trace_stop"() : () -> ()
    %108 = vector.shape_cast %107 : vector<2x8x8xf32> to vector<16x8xf32>
    %109 = arith.truncf %108 : vector<16x8xf32> to vector<16x8xbf16>
    %c1_73 = arith.constant 1 : index
    %c0_74 = arith.constant 0 : index
    %c0_75 = arith.constant 0 : index
    %110 = vector.load %arg4[%c1_73, %c0_74, %c0_75] : memref<4x8x32xbf16, #tpu.memory_space<vmem>>, vector<1x8x32xbf16>
    %111 = vector.shape_cast %110 : vector<1x8x32xbf16> to vector<8x32xbf16>
    %cst_76 = arith.constant dense<0.000000e+00> : vector<16x32xf32>
    %112 = tpu.matmul %109, %111, %cst_76 {dimension_numbers = #tpu.dot_dimension_numbers<[1], [0], [0], [1], [0, 0, 1, 1], [], []>} : vector<16x8xbf16>, vector<8x32xbf16>, vector<16x32xf32> -> vector<16x32xf32>
    %113 = arith.addf %65, %112 : vector<16x32xf32>
    %c0_77 = arith.constant 0 : index
    %c2_78 = arith.constant 2 : index
    %c0_79 = arith.constant 0 : index
    %c0_80 = arith.constant 0 : index
    %114 = vector.load %arg2[%c0_77, %c2_78, %c0_79, %c0_80] : memref<3x4x32x8xbf16, #tpu.memory_space<vmem>>, vector<1x1x32x8xbf16>
    %115 = vector.shape_cast %114 : vector<1x1x32x8xbf16> to vector<32x8xbf16>
    %cst_81 = arith.constant dense<0.000000e+00> : vector<16x8xf32>
    %116 = tpu.matmul %7, %115, %cst_81 {dimension_numbers = #tpu.dot_dimension_numbers<[1], [0], [0], [1], [0, 0, 1, 1], [], []>} : vector<16x32xbf16>, vector<32x8xbf16>, vector<16x8xf32> -> vector<16x8xf32>
    %c0_82 = arith.constant 0 : index
    %c2_83 = arith.constant 2 : index
    %c0_84 = arith.constant 0 : index
    %c0_85 = arith.constant 0 : index
    %117 = vector.load %arg3[%c0_82, %c2_83, %c0_84, %c0_85] : memref<3x4x1x8xf32, #tpu.memory_space<vmem>>, vector<1x1x1x8xf32>
    %118 = vector.shape_cast %117 : vector<1x1x1x8xf32> to vector<1x8xf32>
    %119 = vector.broadcast %118 : vector<1x8xf32> to vector<16x8xf32>
    %120 = arith.addf %116, %119 : vector<16x8xf32>
    %c1_86 = arith.constant 1 : index
    %c2_87 = arith.constant 2 : index
    %c0_88 = arith.constant 0 : index
    %c0_89 = arith.constant 0 : index
    %121 = vector.load %arg2[%c1_86, %c2_87, %c0_88, %c0_89] : memref<3x4x32x8xbf16, #tpu.memory_space<vmem>>, vector<1x1x32x8xbf16>
    %122 = vector.shape_cast %121 : vector<1x1x32x8xbf16> to vector<32x8xbf16>
    %cst_90 = arith.constant dense<0.000000e+00> : vector<16x8xf32>
    %123 = tpu.matmul %7, %122, %cst_90 {dimension_numbers = #tpu.dot_dimension_numbers<[1], [0], [0], [1], [0, 0, 1, 1], [], []>} : vector<16x32xbf16>, vector<32x8xbf16>, vector<16x8xf32> -> vector<16x8xf32>
    %c1_91 = arith.constant 1 : index
    %c2_92 = arith.constant 2 : index
    %c0_93 = arith.constant 0 : index
    %c0_94 = arith.constant 0 : index
    %124 = vector.load %arg3[%c1_91, %c2_92, %c0_93, %c0_94] : memref<3x4x1x8xf32, #tpu.memory_space<vmem>>, vector<1x1x1x8xf32>
    %125 = vector.shape_cast %124 : vector<1x1x1x8xf32> to vector<1x8xf32>
    %126 = vector.broadcast %125 : vector<1x8xf32> to vector<16x8xf32>
    %127 = arith.addf %123, %126 : vector<16x8xf32>
    %c2_95 = arith.constant 2 : index
    %c2_96 = arith.constant 2 : index
    %c0_97 = arith.constant 0 : index
    %c0_98 = arith.constant 0 : index
    %128 = vector.load %arg2[%c2_95, %c2_96, %c0_97, %c0_98] : memref<3x4x32x8xbf16, #tpu.memory_space<vmem>>, vector<1x1x32x8xbf16>
    %129 = vector.shape_cast %128 : vector<1x1x32x8xbf16> to vector<32x8xbf16>
    %cst_99 = arith.constant dense<0.000000e+00> : vector<16x8xf32>
    %130 = tpu.matmul %5, %129, %cst_99 {dimension_numbers = #tpu.dot_dimension_numbers<[1], [0], [0], [1], [0, 0, 1, 1], [], []>} : vector<16x32xbf16>, vector<32x8xbf16>, vector<16x8xf32> -> vector<16x8xf32>
    %c2_100 = arith.constant 2 : index
    %c2_101 = arith.constant 2 : index
    %c0_102 = arith.constant 0 : index
    %c0_103 = arith.constant 0 : index
    %131 = vector.load %arg3[%c2_100, %c2_101, %c0_102, %c0_103] : memref<3x4x1x8xf32, #tpu.memory_space<vmem>>, vector<1x1x1x8xf32>
    %132 = vector.shape_cast %131 : vector<1x1x1x8xf32> to vector<1x8xf32>
    %133 = vector.broadcast %132 : vector<1x8xf32> to vector<16x8xf32>
    %134 = arith.addf %130, %133 : vector<16x8xf32>
    %135 = vector.shape_cast %120 : vector<16x8xf32> to vector<2x8x8xf32>
    %136 = arith.truncf %135 : vector<2x8x8xf32> to vector<2x8x8xbf16>
    %137 = vector.shape_cast %127 : vector<16x8xf32> to vector<2x8x8xf32>
    %138 = arith.truncf %137 : vector<2x8x8xf32> to vector<2x8x8xbf16>
    %139 = vector.shape_cast %134 : vector<16x8xf32> to vector<2x8x8xf32>
    %140 = arith.truncf %139 : vector<2x8x8xf32> to vector<2x8x8xbf16>
    "tpu.trace_start"() <{level = 10 : i32, message = "bqd,bkd->bqk"}> : () -> ()
    %cst_104 = arith.constant dense<0.000000e+00> : vector<2x8x8xf32>
    %141 = tpu.matmul %136, %138, %cst_104 {dimension_numbers = #tpu.dot_dimension_numbers<[2], [2], [1], [1], [0, 0, 0, 1, 1, 1], [0], [0]>} : vector<2x8x8xbf16>, vector<2x8x8xbf16>, vector<2x8x8xf32> -> vector<2x8x8xf32>
    "tpu.trace_stop"() : () -> ()
    %cst_105 = arith.constant 0.353553385 : f32
    %142 = vector.broadcast %cst_105 : f32 to vector<2x8x8xf32>
    %143 = arith.mulf %141, %142 : vector<2x8x8xf32>
    %cst_106 = arith.constant dense<0xFF800000> : vector<2x8xf32>
    %144 = vector.multi_reduction <maximumf>, %143, %cst_106 [2] : vector<2x8x8xf32> to vector<2x8xf32>
    %145 = vector.shape_cast %144 : vector<2x8xf32> to vector<2x8x1xf32>
    %146 = vector.broadcast %145 : vector<2x8x1xf32> to vector<2x8x8xf32>
    %147 = arith.subf %143, %146 : vector<2x8x8xf32>
    %148 = math.exp %147 : vector<2x8x8xf32>
    %cst_107 = arith.constant dense<0.000000e+00> : vector<2x8xf32>
    %149 = vector.multi_reduction <add>, %148, %cst_107 [2] : vector<2x8x8xf32> to vector<2x8xf32>
    %150 = vector.shape_cast %149 : vector<2x8xf32> to vector<2x8x1xf32>
    %151 = tpu.reciprocal %150 {approx = true} : vector<2x8x1xf32> -> vector<2x8x1xf32>
    %152 = vector.broadcast %151 : vector<2x8x1xf32> to vector<2x8x8xf32>
    %153 = arith.mulf %148, %152 : vector<2x8x8xf32>
    %154 = arith.truncf %153 : vector<2x8x8xf32> to vector<2x8x8xbf16>
    "tpu.trace_start"() <{level = 10 : i32, message = "bqk,bkd->bqd"}> : () -> ()
    %cst_108 = arith.constant dense<0.000000e+00> : vector<2x8x8xf32>
    %155 = tpu.matmul %154, %140, %cst_108 {dimension_numbers = #tpu.dot_dimension_numbers<[2], [1], [1], [2], [0, 0, 0, 1, 1, 2], [0], [0]>} : vector<2x8x8xbf16>, vector<2x8x8xbf16>, vector<2x8x8xf32> -> vector<2x8x8xf32>
    "tpu.trace_stop"() : () -> ()
    %156 = vector.shape_cast %155 : vector<2x8x8xf32> to vector<16x8xf32>
    %157 = arith.truncf %156 : vector<16x8xf32> to vector<16x8xbf16>
    %c2_109 = arith.constant 2 : index
    %c0_110 = arith.constant 0 : index
    %c0_111 = arith.constant 0 : index
    %158 = vector.load %arg4[%c2_109, %c0_110, %c0_111] : memref<4x8x32xbf16, #tpu.memory_space<vmem>>, vector<1x8x32xbf16>
    %159 = vector.shape_cast %158 : vector<1x8x32xbf16> to vector<8x32xbf16>
    %cst_112 = arith.constant dense<0.000000e+00> : vector<16x32xf32>
    %160 = tpu.matmul %157, %159, %cst_112 {dimension_numbers = #tpu.dot_dimension_numbers<[1], [0], [0], [1], [0, 0, 1, 1], [], []>} : vector<16x8xbf16>, vector<8x32xbf16>, vector<16x32xf32> -> vector<16x32xf32>
    %161 = arith.addf %113, %160 : vector<16x32xf32>
    %c0_113 = arith.constant 0 : index
    %c3 = arith.constant 3 : index
    %c0_114 = arith.constant 0 : index
    %c0_115 = arith.constant 0 : index
    %162 = vector.load %arg2[%c0_113, %c3, %c0_114, %c0_115] : memref<3x4x32x8xbf16, #tpu.memory_space<vmem>>, vector<1x1x32x8xbf16>
    %163 = vector.shape_cast %162 : vector<1x1x32x8xbf16> to vector<32x8xbf16>
    %cst_116 = arith.constant dense<0.000000e+00> : vector<16x8xf32>
    %164 = tpu.matmul %7, %163, %cst_116 {dimension_numbers = #tpu.dot_dimension_numbers<[1], [0], [0], [1], [0, 0, 1, 1], [], []>} : vector<16x32xbf16>, vector<32x8xbf16>, vector<16x8xf32> -> vector<16x8xf32>
    %c0_117 = arith.constant 0 : index
    %c3_118 = arith.constant 3 : index
    %c0_119 = arith.constant 0 : index
    %c0_120 = arith.constant 0 : index
    %165 = vector.load %arg3[%c0_117, %c3_118, %c0_119, %c0_120] : memref<3x4x1x8xf32, #tpu.memory_space<vmem>>, vector<1x1x1x8xf32>
    %166 = vector.shape_cast %165 : vector<1x1x1x8xf32> to vector<1x8xf32>
    %167 = vector.broadcast %166 : vector<1x8xf32> to vector<16x8xf32>
    %168 = arith.addf %164, %167 : vector<16x8xf32>
    %c1_121 = arith.constant 1 : index
    %c3_122 = arith.constant 3 : index
    %c0_123 = arith.constant 0 : index
    %c0_124 = arith.constant 0 : index
    %169 = vector.load %arg2[%c1_121, %c3_122, %c0_123, %c0_124] : memref<3x4x32x8xbf16, #tpu.memory_space<vmem>>, vector<1x1x32x8xbf16>
    %170 = vector.shape_cast %169 : vector<1x1x32x8xbf16> to vector<32x8xbf16>
    %cst_125 = arith.constant dense<0.000000e+00> : vector<16x8xf32>
    %171 = tpu.matmul %7, %170, %cst_125 {dimension_numbers = #tpu.dot_dimension_numbers<[1], [0], [0], [1], [0, 0, 1, 1], [], []>} : vector<16x32xbf16>, vector<32x8xbf16>, vector<16x8xf32> -> vector<16x8xf32>
    %c1_126 = arith.constant 1 : index
    %c3_127 = arith.constant 3 : index
    %c0_128 = arith.constant 0 : index
    %c0_129 = arith.constant 0 : index
    %172 = vector.load %arg3[%c1_126, %c3_127, %c0_128, %c0_129] : memref<3x4x1x8xf32, #tpu.memory_space<vmem>>, vector<1x1x1x8xf32>
    %173 = vector.shape_cast %172 : vector<1x1x1x8xf32> to vector<1x8xf32>
    %174 = vector.broadcast %173 : vector<1x8xf32> to vector<16x8xf32>
    %175 = arith.addf %171, %174 : vector<16x8xf32>
    %c2_130 = arith.constant 2 : index
    %c3_131 = arith.constant 3 : index
    %c0_132 = arith.constant 0 : index
    %c0_133 = arith.constant 0 : index
    %176 = vector.load %arg2[%c2_130, %c3_131, %c0_132, %c0_133] : memref<3x4x32x8xbf16, #tpu.memory_space<vmem>>, vector<1x1x32x8xbf16>
    %177 = vector.shape_cast %176 : vector<1x1x32x8xbf16> to vector<32x8xbf16>
    %cst_134 = arith.constant dense<0.000000e+00> : vector<16x8xf32>
    %178 = tpu.matmul %5, %177, %cst_134 {dimension_numbers = #tpu.dot_dimension_numbers<[1], [0], [0], [1], [0, 0, 1, 1], [], []>} : vector<16x32xbf16>, vector<32x8xbf16>, vector<16x8xf32> -> vector<16x8xf32>
    %c2_135 = arith.constant 2 : index
    %c3_136 = arith.constant 3 : index
    %c0_137 = arith.constant 0 : index
    %c0_138 = arith.constant 0 : index
    %179 = vector.load %arg3[%c2_135, %c3_136, %c0_137, %c0_138] : memref<3x4x1x8xf32, #tpu.memory_space<vmem>>, vector<1x1x1x8xf32>
    %180 = vector.shape_cast %179 : vector<1x1x1x8xf32> to vector<1x8xf32>
    %181 = vector.broadcast %180 : vector<1x8xf32> to vector<16x8xf32>
    %182 = arith.addf %178, %181 : vector<16x8xf32>
    %183 = vector.shape_cast %168 : vector<16x8xf32> to vector<2x8x8xf32>
    %184 = arith.truncf %183 : vector<2x8x8xf32> to vector<2x8x8xbf16>
    %185 = vector.shape_cast %175 : vector<16x8xf32> to vector<2x8x8xf32>
    %186 = arith.truncf %185 : vector<2x8x8xf32> to vector<2x8x8xbf16>
    %187 = vector.shape_cast %182 : vector<16x8xf32> to vector<2x8x8xf32>
    %188 = arith.truncf %187 : vector<2x8x8xf32> to vector<2x8x8xbf16>
    "tpu.trace_start"() <{level = 10 : i32, message = "bqd,bkd->bqk"}> : () -> ()
    %cst_139 = arith.constant dense<0.000000e+00> : vector<2x8x8xf32>
    %189 = tpu.matmul %184, %186, %cst_139 {dimension_numbers = #tpu.dot_dimension_numbers<[2], [2], [1], [1], [0, 0, 0, 1, 1, 1], [0], [0]>} : vector<2x8x8xbf16>, vector<2x8x8xbf16>, vector<2x8x8xf32> -> vector<2x8x8xf32>
    "tpu.trace_stop"() : () -> ()
    %cst_140 = arith.constant 0.353553385 : f32
    %190 = vector.broadcast %cst_140 : f32 to vector<2x8x8xf32>
    %191 = arith.mulf %189, %190 : vector<2x8x8xf32>
    %cst_141 = arith.constant dense<0xFF800000> : vector<2x8xf32>
    %192 = vector.multi_reduction <maximumf>, %191, %cst_141 [2] : vector<2x8x8xf32> to vector<2x8xf32>
    %193 = vector.shape_cast %192 : vector<2x8xf32> to vector<2x8x1xf32>
    %194 = vector.broadcast %193 : vector<2x8x1xf32> to vector<2x8x8xf32>
    %195 = arith.subf %191, %194 : vector<2x8x8xf32>
    %196 = math.exp %195 : vector<2x8x8xf32>
    %cst_142 = arith.constant dense<0.000000e+00> : vector<2x8xf32>
    %197 = vector.multi_reduction <add>, %196, %cst_142 [2] : vector<2x8x8xf32> to vector<2x8xf32>
    %198 = vector.shape_cast %197 : vector<2x8xf32> to vector<2x8x1xf32>
    %199 = tpu.reciprocal %198 {approx = true} : vector<2x8x1xf32> -> vector<2x8x1xf32>
    %200 = vector.broadcast %199 : vector<2x8x1xf32> to vector<2x8x8xf32>
    %201 = arith.mulf %196, %200 : vector<2x8x8xf32>
    %202 = arith.truncf %201 : vector<2x8x8xf32> to vector<2x8x8xbf16>
    "tpu.trace_start"() <{level = 10 : i32, message = "bqk,bkd->bqd"}> : () -> ()
    %cst_143 = arith.constant dense<0.000000e+00> : vector<2x8x8xf32>
    %203 = tpu.matmul %202, %188, %cst_143 {dimension_numbers = #tpu.dot_dimension_numbers<[2], [1], [1], [2], [0, 0, 0, 1, 1, 2], [0], [0]>} : vector<2x8x8xbf16>, vector<2x8x8xbf16>, vector<2x8x8xf32> -> vector<2x8x8xf32>
    "tpu.trace_stop"() : () -> ()
    %204 = vector.shape_cast %203 : vector<2x8x8xf32> to vector<16x8xf32>
    %205 = arith.truncf %204 : vector<16x8xf32> to vector<16x8xbf16>
    %c3_144 = arith.constant 3 : index
    %c0_145 = arith.constant 0 : index
    %c0_146 = arith.constant 0 : index
    %206 = vector.load %arg4[%c3_144, %c0_145, %c0_146] : memref<4x8x32xbf16, #tpu.memory_space<vmem>>, vector<1x8x32xbf16>
    %207 = vector.shape_cast %206 : vector<1x8x32xbf16> to vector<8x32xbf16>
    %cst_147 = arith.constant dense<0.000000e+00> : vector<16x32xf32>
    %208 = tpu.matmul %205, %207, %cst_147 {dimension_numbers = #tpu.dot_dimension_numbers<[1], [0], [0], [1], [0, 0, 1, 1], [], []>} : vector<16x8xbf16>, vector<8x32xbf16>, vector<16x32xf32> -> vector<16x32xf32>
    %209 = arith.addf %161, %208 : vector<16x32xf32>
    %210 = arith.addf %4, %209 : vector<16x32xf32>
    %cst_148 = arith.constant dense<0.000000e+00> : vector<16xf32>
    %211 = vector.multi_reduction <add>, %210, %cst_148 [1] : vector<16x32xf32> to vector<16xf32>
    %212 = vector.shape_cast %211 : vector<16xf32> to vector<16x1xf32>
    %cst_149 = arith.constant 3.200000e+01 : f32
    %213 = vector.broadcast %cst_149 : f32 to vector<16x1xf32>
    %214 = arith.divf %212, %213 : vector<16x1xf32>
    %215 = vector.broadcast %214 : vector<16x1xf32> to vector<16x32xf32>
    %216 = arith.subf %210, %215 : vector<16x32xf32>
    %217 = arith.mulf %216, %216 : vector<16x32xf32>
    %cst_150 = arith.constant dense<0.000000e+00> : vector<16xf32>
    %218 = vector.multi_reduction <add>, %217, %cst_150 [1] : vector<16x32xf32> to vector<16xf32>
    %219 = vector.shape_cast %218 : vector<16xf32> to vector<16x1xf32>
    %cst_151 = arith.constant 3.200000e+01 : f32
    %220 = vector.broadcast %cst_151 : f32 to vector<16x1xf32>
    %221 = arith.divf %219, %220 : vector<16x1xf32>
    %222 = vector.broadcast %214 : vector<16x1xf32> to vector<16x32xf32>
    %223 = arith.subf %210, %222 : vector<16x32xf32>
    %cst_152 = arith.constant 9.99999974E-6 : f32
    %224 = vector.broadcast %cst_152 : f32 to vector<16x1xf32>
    %225 = arith.addf %221, %224 : vector<16x1xf32>
    %226 = math.rsqrt %225 : vector<16x1xf32>
    %227 = vector.broadcast %226 : vector<16x1xf32> to vector<16x32xf32>
    %228 = arith.mulf %223, %227 : vector<16x32xf32>
    %229 = vector.broadcast %10 : vector<1x32xf32> to vector<16x32xf32>
    %230 = arith.mulf %228, %229 : vector<16x32xf32>
    %231 = vector.broadcast %11 : vector<1x32xf32> to vector<16x32xf32>
    %232 = arith.addf %230, %231 : vector<16x32xf32>
    %233 = arith.truncf %232 : vector<16x32xf32> to vector<16x32xbf16>
    %c0_153 = arith.constant 0 : index
    %c0_154 = arith.constant 0 : index
    %234 = vector.load %arg5[%c0_153, %c0_154] : memref<32x64xbf16, #tpu.memory_space<vmem>>, vector<32x64xbf16>
    %cst_155 = arith.constant dense<0.000000e+00> : vector<16x64xf32>
    %235 = tpu.matmul %233, %234, %cst_155 {dimension_numbers = #tpu.dot_dimension_numbers<[1], [0], [0], [1], [0, 0, 1, 1], [], []>} : vector<16x32xbf16>, vector<32x64xbf16>, vector<16x64xf32> -> vector<16x64xf32>
    %c0_156 = arith.constant 0 : index
    %c0_157 = arith.constant 0 : index
    %236 = vector.load %arg6[%c0_156, %c0_157] : memref<1x64xf32, #tpu.memory_space<vmem>>, vector<1x64xf32>
    %237 = vector.broadcast %236 : vector<1x64xf32> to vector<16x64xf32>
    %238 = arith.addf %235, %237 : vector<16x64xf32>
    %cst_158 = arith.constant 0.000000e+00 : f32
    %239 = vector.broadcast %cst_158 : f32 to vector<16x64xf32>
    %240 = arith.maximumf %238, %239 : vector<16x64xf32>
    %241 = arith.truncf %240 : vector<16x64xf32> to vector<16x64xbf16>
    %c0_159 = arith.constant 0 : index
    %c0_160 = arith.constant 0 : index
    %242 = vector.load %arg7[%c0_159, %c0_160] : memref<64x32xbf16, #tpu.memory_space<vmem>>, vector<64x32xbf16>
    %cst_161 = arith.constant dense<0.000000e+00> : vector<16x32xf32>
    %243 = tpu.matmul %241, %242, %cst_161 {dimension_numbers = #tpu.dot_dimension_numbers<[1], [0], [0], [1], [0, 0, 1, 1], [], []>} : vector<16x64xbf16>, vector<64x32xbf16>, vector<16x32xf32> -> vector<16x32xf32>
    %244 = vector.broadcast %12 : vector<1x32xf32> to vector<16x32xf32>
    %245 = arith.addf %243, %244 : vector<16x32xf32>
    %246 = arith.addf %245, %232 : vector<16x32xf32>
    %cst_162 = arith.constant dense<0.000000e+00> : vector<16xf32>
    %247 = vector.multi_reduction <add>, %246, %cst_162 [1] : vector<16x32xf32> to vector<16xf32>
    %248 = vector.shape_cast %247 : vector<16xf32> to vector<16x1xf32>
    %cst_163 = arith.constant 3.200000e+01 : f32
    %249 = vector.broadcast %cst_163 : f32 to vector<16x1xf32>
    %250 = arith.divf %248, %249 : vector<16x1xf32>
    %251 = vector.broadcast %250 : vector<16x1xf32> to vector<16x32xf32>
    %252 = arith.subf %246, %251 : vector<16x32xf32>
    %253 = arith.mulf %252, %252 : vector<16x32xf32>
    %cst_164 = arith.constant dense<0.000000e+00> : vector<16xf32>
    %254 = vector.multi_reduction <add>, %253, %cst_164 [1] : vector<16x32xf32> to vector<16xf32>
    %255 = vector.shape_cast %254 : vector<16xf32> to vector<16x1xf32>
    %cst_165 = arith.constant 3.200000e+01 : f32
    %256 = vector.broadcast %cst_165 : f32 to vector<16x1xf32>
    %257 = arith.divf %255, %256 : vector<16x1xf32>
    %258 = vector.broadcast %250 : vector<16x1xf32> to vector<16x32xf32>
    %259 = arith.subf %246, %258 : vector<16x32xf32>
    %cst_166 = arith.constant 9.99999974E-6 : f32
    %260 = vector.broadcast %cst_166 : f32 to vector<16x1xf32>
    %261 = arith.addf %257, %260 : vector<16x1xf32>
    %262 = math.rsqrt %261 : vector<16x1xf32>
    %263 = vector.broadcast %262 : vector<16x1xf32> to vector<16x32xf32>
    %264 = arith.mulf %259, %263 : vector<16x32xf32>
    %265 = vector.broadcast %13 : vector<1x32xf32> to vector<16x32xf32>
    %266 = arith.mulf %264, %265 : vector<16x32xf32>
    %267 = vector.broadcast %14 : vector<1x32xf32> to vector<16x32xf32>
    %268 = arith.addf %266, %267 : vector<16x32xf32>
    %c0_167 = arith.constant 0 : index
    %c0_168 = arith.constant 0 : index
    %269 = vector.load %arg9[%c0_167, %c0_168] : memref<16x32xf32, #tpu.memory_space<vmem>>, vector<16x32xf32>
    tpu.vector_store %arg9[%c0_167, %c0_168], %268 {strides = array<i32>} : memref<16x32xf32, #tpu.memory_space<vmem>>, vector<16x32xf32>,
    return
  }
}

</mosaic_0001>

<llo_original>
// kernel: tpu_custom_call.1
$region0: #{tpu_custom_call.1}
  #allocation0 [shape = 'u32[]', space=smem, size = 0x4, offset = 0x4, fixed_abs, tag = 'smem constant byte address 0x4 - core index']
  #allocation1 [shape = 'u32[144,128]{1,0:T(1,128)}', space=vmem, size = 0x12000, scoped, tag = 'internal scratch']
  %s0 = inlined_call_operand.vmem [shape: f32[2,8,32], index: 0, kind: input, shape index: {}]
  %s1 = inlined_call_operand.vmem [shape: f32[1,8,32], index: 1, kind: input, shape index: {}]
  %s2 = inlined_call_operand.vmem [shape: bf16[3,4,32,8], index: 2, kind: input, shape index: {}]
  %s3 = inlined_call_operand.vmem [shape: f32[3,4,1,8], index: 3, kind: input, shape index: {}]
  %s4 = inlined_call_operand.vmem [shape: bf16[4,8,32], index: 4, kind: input, shape index: {}]
  %s5 = inlined_call_operand.vmem [shape: bf16[32,64], index: 5, kind: input, shape index: {}]
  %s6 = inlined_call_operand.vmem [shape: f32[1,64], index: 6, kind: input, shape index: {}]
  %s7 = inlined_call_operand.vmem [shape: bf16[64,32], index: 7, kind: input, shape index: {}]
  %s8 = inlined_call_operand.vmem [shape: f32[8,32], index: 8, kind: input, shape index: {}]
  %s9 = inlined_call_operand.hbm [shape: f32[16,32], index: 9, kind: output, shape index: {}]
  %s10 = sld [smem:[#allocation0]]
  $region46: #{tpu_custom_call.1} parent=0
    _
  %s12 = ssub.s32 1, %s10
  %s13 = scalar_select 0, %s12, %s10
  $region1: #{tpu_custom_call.1} parent=0
    #allocation2 [shape = 'u8[8192]{0}', space=vmem, size = 0x2000, scoped, tag = 'output window, operand 0, single buffered']
    #allocation3 [shape = 's32[1]{0}', space=sflag, size = 0x4, scoped, tag = 'scoped memory for tpu_custom_call.1']
    %14 = vsyncpa [#allocation3], 0
    // Predicated region
    $region2: #{tpu_custom_call.1} parent=1 // pred_check
      _
    $region3: #{tpu_custom_call.1} parent=1 // pred_check_branch
      %16 = sbr.rel (0) target = $region5
    $region4: #{tpu_custom_call.1} parent=1 // pred_region
      _
    $region5: #{tpu_custom_call.1} parent=1 // pred_fallthru
      _
    // Predicated region
    $region6: #{tpu_custom_call.1} parent=1 // pred_check
      _
    $region7: #{tpu_custom_call.1} parent=1 // pred_check_branch
      %18 = sbr.rel (0) target = $region9
    $region8: #{tpu_custom_call.1} parent=1 // pred_region
      _
    $region9: #{tpu_custom_call.1} parent=1 // pred_fallthru
      _
    // Predicated region
    $region10: #{tpu_custom_call.1} parent=1 // pred_check
      _
    $region11: #{tpu_custom_call.1} parent=1 // pred_check_branch
      %20 = sbr.rel (0) target = $region13
    $region12: #{tpu_custom_call.1} parent=1 // pred_region
      _
    $region13: #{tpu_custom_call.1} parent=1 // pred_fallthru
      _
    // Predicated region
    $region14: #{tpu_custom_call.1} parent=1 // pred_check
      _
    $region15: #{tpu_custom_call.1} parent=1 // pred_check_branch
      %22 = sbr.rel (0) target = $region17
    $region16: #{tpu_custom_call.1} parent=1 // pred_region
      _
    $region17: #{tpu_custom_call.1} parent=1 // pred_fallthru
      _
    // Predicated region
    $region18: #{tpu_custom_call.1} parent=1 // pred_check
      _
    $region19: #{tpu_custom_call.1} parent=1 // pred_check_branch
      %24 = sbr.rel (0) target = $region21
    $region20: #{tpu_custom_call.1} parent=1 // pred_region
      _
    $region21: #{tpu_custom_call.1} parent=1 // pred_fallthru
      _
    // Predicated region
    $region22: #{tpu_custom_call.1} parent=1 // pred_check
      _
    $region23: #{tpu_custom_call.1} parent=1 // pred_check_branch
      %26 = sbr.rel (0) target = $region25
    $region24: #{tpu_custom_call.1} parent=1 // pred_region
      _
    $region25: #{tpu_custom_call.1} parent=1 // pred_fallthru
      _
    // Predicated region
    $region26: #{tpu_custom_call.1} parent=1 // pred_check
      _
    $region27: #{tpu_custom_call.1} parent=1 // pred_check_branch
      %28 = sbr.rel (0) target = $region29
    $region28: #{tpu_custom_call.1} parent=1 // pred_region
      _
    $region29: #{tpu_custom_call.1} parent=1 // pred_fallthru
      _
    // Predicated region
    $region30: #{tpu_custom_call.1} parent=1 // pred_check
      _
    $region31: #{tpu_custom_call.1} parent=1 // pred_check_branch
      %30 = sbr.rel (0) target = $region33
    $region32: #{tpu_custom_call.1} parent=1 // pred_region
      _
    $region33: #{tpu_custom_call.1} parent=1 // pred_fallthru
      _
    // Predicated region
    $region34: #{tpu_custom_call.1} parent=1 // pred_check
      _
    $region35: #{tpu_custom_call.1} parent=1 // pred_check_branch
      %32 = sbr.rel (0) target = $region37
    $region36: #{tpu_custom_call.1} parent=1 // pred_region
      _
    $region37: #{tpu_custom_call.1} parent=1 // pred_fallthru
      _
    %v34 = vld [vmem:[%s0] sm:$0xff]
    %v35 = vld [vmem:[%s0 + $0x8] sm:$0xff]
    %v36 = vld [vmem:[%s1] sm:$0xff]
    %v37 = vadd.f32 %v34, %v36
    %v38 = vadd.f32 %v35, %v36
    %v39 = vpack.c.bf16 %v35, %v34
    %v40 = vpack.c.bf16 %v38, %v37
    %v41 = vld [vmem:[%s8] sm:$0xff]
    %v42 = vlaneseq
    %v43 = vshrl.u32 %v42, 7
    %v44 = vsub.s32 0, %v43
    %v45 = vrot.slane %v41, %v44
    %v46 = vadd.f32 %v45, 0.0
    %v47 = vld [vmem:[%s2] sm:$0xf]
    %v48 = vld [vmem:[%s2 + $0x4] sm:$0xf]
    %v49 = vld [vmem:[%s2 + $0x8] sm:$0xf]
    %v50 = vld [vmem:[%s2 + $0xc] sm:$0xf]
    %v51 = vld [vmem:[%s3] sm:$0x1]
    %v53 = vlaneseq
    %v54 = vshrl.u32 %v53, 7
    %v55 = vsub.s32 0, %v54
    %v56 = vrot.slane %v51, %v55
    %v62 = vunpack.c.l.b16 %v47
    %v63 = vunpack.c.l.b16 %v48
    %v64 = vunpack.c.l.b16 %v49
    %v65 = vunpack.c.l.b16 %v50
    %v66 = vpack.c.b16 %v63, %v62
    %v67 = vpack.c.b16 %v65, %v64
    %vm70 = vcmask 261120
    %v72 = vsel %vm70, %v40, 0
    %74 = vmatprep.subr.bf16.mxu0 0
    %75 = vmatpush1.bf16.msra.mxu0 %v66
    %76 = vmatprep.subr.bf16.mxu0 0
    %77 = vmatpush1.bf16.msra.mxu0 %v67
    %78 = vmatprep.subr.bf16.mxu0 0
    %79 = vmatpush1.bf16.msra.mxu0 0
    %80 = vmatprep.subr.bf16.mxu0 0
    %81 = vmatpush1.bf16.msra.mxu0 0
    %82 = vmatprep.subr.bf16.mxu0 0
    %83 = vmatpush1.bf16.msra.mxu0 0
    %84 = vmatprep.subr.bf16.mxu0 0
    %85 = vmatpush1.bf16.msra.mxu0 0
    %86 = vmatprep.subr.bf16.mxu0 0
    %87 = vmatpush1.bf16.msra.mxu0 0
    %88 = vmatprep.subr.bf16.mxu0 0
    %89 = vmatpush1.bf16.msra.mxu0 0
    %90 = vmatprep.subr.bf16.mxu0 0
    %91 = vmatpush1.bf16.msra.mxu0 0
    %92 = vmatprep.subr.bf16.mxu0 0
    %93 = vmatpush1.bf16.msra.mxu0 0
    %94 = vmatprep.subr.bf16.mxu0 0
    %95 = vmatpush1.bf16.msra.mxu0 0
    %96 = vmatprep.subr.bf16.mxu0 0
    %97 = vmatpush1.bf16.msra.mxu0 0
    %98 = vmatprep.subr.bf16.mxu0 0
    %99 = vmatpush1.bf16.msra.mxu0 0
    %100 = vmatprep.subr.bf16.mxu0 0
    %101 = vmatpush1.bf16.msra.mxu0 0
    %102 = vmatprep.subr.bf16.mxu0 0
    %103 = vmatpush1.bf16.msra.mxu0 0
    %104 = vmatprep.subr.bf16.mxu0 0
    %105 = vmatpush1.bf16.msra.mxu0 0
    %106 = vmatprep.mubr.bf16.mxu0 0
    %107 = vmatmul.mubr.bf16.gmra.mrb[0].mxu0 %v72
    %v108 = vpop.f32.mrb[0].mxu0
    %v109 = vadd.f32 %v56, %v108
    %v110 = vpop.f32.mrb[0].mxu0
    %v111 = vpop.f32.mrb[0].mxu0
    %v112 = vadd.f32 %v56, %v111
    %v113 = vpop.f32.mrb[0].mxu0
    %114 = vdwg.mxu0
    %s115 = scalar_lea.vmem %s2, 64
    %v116 = vld [vmem:[%s115] sm:$0xf]
    %v117 = vld [vmem:[%s115 + $0x4] sm:$0xf]
    %v118 = vld [vmem:[%s115 + $0x8] sm:$0xf]
    %v119 = vld [vmem:[%s115 + $0xc] sm:$0xf]
    %s120 = scalar_lea.vmem %s3, 4
    %v121 = vld [vmem:[%s120] sm:$0x1]
    %v123 = vlaneseq
    %v124 = vshrl.u32 %v123, 7
    %v125 = vsub.s32 0, %v124
    %v126 = vrot.slane %v121, %v125
    %v132 = vunpack.c.l.b16 %v116
    %v133 = vunpack.c.l.b16 %v117
    %v134 = vunpack.c.l.b16 %v118
    %v135 = vunpack.c.l.b16 %v119
    %v136 = vpack.c.b16 %v133, %v132
    %v137 = vpack.c.b16 %v135, %v134
    %140 = vmatprep.subr.bf16.mxu0 0
    %141 = vmatpush1.bf16.msra.mxu0 %v136
    %142 = vmatprep.subr.bf16.mxu0 0
    %143 = vmatpush1.bf16.msra.mxu0 %v137
    %144 = vmatprep.subr.bf16.mxu0 0
    %145 = vmatpush1.bf16.msra.mxu0 0
    %146 = vmatprep.subr.bf16.mxu0 0
    %147 = vmatpush1.bf16.msra.mxu0 0
    %148 = vmatprep.subr.bf16.mxu0 0
    %149 = vmatpush1.bf16.msra.mxu0 0
    %150 = vmatprep.subr.bf16.mxu0 0
    %151 = vmatpush1.bf16.msra.mxu0 0
    %152 = vmatprep.subr.bf16.mxu0 0
    %153 = vmatpush1.bf16.msra.mxu0 0
    %154 = vmatprep.subr.bf16.mxu0 0
    %155 = vmatpush1.bf16.msra.mxu0 0
    %156 = vmatprep.subr.bf16.mxu0 0
    %157 = vmatpush1.bf16.msra.mxu0 0
    %158 = vmatprep.subr.bf16.mxu0 0
    %159 = vmatpush1.bf16.msra.mxu0 0
    %160 = vmatprep.subr.bf16.mxu0 0
    %161 = vmatpush1.bf16.msra.mxu0 0
    %162 = vmatprep.subr.bf16.mxu0 0
    %163 = vmatpush1.bf16.msra.mxu0 0
    %164 = vmatprep.subr.bf16.mxu0 0
    %165 = vmatpush1.bf16.msra.mxu0 0
    %166 = vmatprep.subr.bf16.mxu0 0
    %167 = vmatpush1.bf16.msra.mxu0 0
    %168 = vmatprep.subr.bf16.mxu0 0
    %169 = vmatpush1.bf16.msra.mxu0 0
    %170 = vmatprep.subr.bf16.mxu0 0
    %171 = vmatpush1.bf16.msra.mxu0 0
    %172 = vmatprep.mubr.bf16.mxu0 0
    %173 = vmatmul.mubr.bf16.gmra.mrb[0].mxu0 %v72
    %v174 = vpop.f32.mrb[0].mxu0
    %v175 = vadd.f32 %v126, %v174
    %v176 = vpop.f32.mrb[0].mxu0
    %v177 = vpop.f32.mrb[0].mxu0
    %v178 = vadd.f32 %v126, %v177
    %v179 = vpop.f32.mrb[0].mxu0
    %180 = vdwg.mxu0
    %s181 = scalar_lea.vmem %s2, 128
    %v182 = vld [vmem:[%s181] sm:$0xf]
    %v183 = vld [vmem:[%s181 + $0x4] sm:$0xf]
    %v184 = vld [vmem:[%s181 + $0x8] sm:$0xf]
    %v185 = vld [vmem:[%s181 + $0xc] sm:$0xf]
    %s186 = scalar_lea.vmem %s3, 8
    %v187 = vld [vmem:[%s186] sm:$0x1]
    %v189 = vlaneseq
    %v190 = vshrl.u32 %v189, 7
    %v191 = vsub.s32 0, %v190
    %v192 = vrot.slane %v187, %v191
    %v198 = vunpack.c.l.b16 %v182
    %v199 = vunpack.c.l.b16 %v183
    %v200 = vunpack.c.l.b16 %v184
    %v201 = vunpack.c.l.b16 %v185
    %v202 = vpack.c.b16 %v199, %v198
    %v203 = vpack.c.b16 %v201, %v200
    %v207 = vsel %vm70, %v39, 0
    %209 = vmatprep.subr.bf16.mxu0 0
    %210 = vmatpush1.bf16.msra.mxu0 %v202
    %211 = vmatprep.subr.bf16.mxu0 0
    %212 = vmatpush1.bf16.msra.mxu0 %v203
    %213 = vmatprep.subr.bf16.mxu0 0
    %214 = vmatpush1.bf16.msra.mxu0 0
    %215 = vmatprep.subr.bf16.mxu0 0
    %216 = vmatpush1.bf16.msra.mxu0 0
    %217 = vmatprep.subr.bf16.mxu0 0
    %218 = vmatpush1.bf16.msra.mxu0 0
    %219 = vmatprep.subr.bf16.mxu0 0
    %220 = vmatpush1.bf16.msra.mxu0 0
    %221 = vmatprep.subr.bf16.mxu0 0
    %222 = vmatpush1.bf16.msra.mxu0 0
    %223 = vmatprep.subr.bf16.mxu0 0
    %224 = vmatpush1.bf16.msra.mxu0 0
    %225 = vmatprep.subr.bf16.mxu0 0
    %226 = vmatpush1.bf16.msra.mxu0 0
    %227 = vmatprep.subr.bf16.mxu0 0
    %228 = vmatpush1.bf16.msra.mxu0 0
    %229 = vmatprep.subr.bf16.mxu0 0
    %230 = vmatpush1.bf16.msra.mxu0 0
    %231 = vmatprep.subr.bf16.mxu0 0
    %232 = vmatpush1.bf16.msra.mxu0 0
    %233 = vmatprep.subr.bf16.mxu0 0
    %234 = vmatpush1.bf16.msra.mxu0 0
    %235 = vmatprep.subr.bf16.mxu0 0
    %236 = vmatpush1.bf16.msra.mxu0 0
    %237 = vmatprep.subr.bf16.mxu0 0
    %238 = vmatpush1.bf16.msra.mxu0 0
    %239 = vmatprep.subr.bf16.mxu0 0
    %240 = vmatpush1.bf16.msra.mxu0 0
    %241 = vmatprep.mubr.bf16.mxu0 0
    %242 = vmatmul.mubr.bf16.gmra.mrb[0].mxu0 %v207
    %v243 = vpop.f32.mrb[0].mxu0
    %v244 = vadd.f32 %v192, %v243
    %v245 = vpop.f32.mrb[0].mxu0
    %v246 = vpop.f32.mrb[0].mxu0
    %v247 = vadd.f32 %v192, %v246
    %v248 = vpop.f32.mrb[0].mxu0
    %249 = vdwg.mxu0
    %v250 = vpack.c.bf16 %v109, %v109
    %v251 = vpack.c.bf16 %v112, %v112
    %v252 = vpack.c.bf16 %v175, %v175
    %v253 = vpack.c.bf16 %v178, %v178
    %v254 = vpack.c.bf16 %v244, %v244
    %v255 = vpack.c.bf16 %v247, %v247
    %vm256 = vcmask 64512
    %v258 = vsel %vm256, %v250, 0
    %v261 = vsel %vm256, %v252, 0
    %263 = vmatprep.subr.bf16.mxu0 0
    %264 = vmatpush1.bf16.xpose.msra.mxu0 %v261
    %265 = vmatprep.subr.bf16.mxu0 0
    %266 = vmatpush1.bf16.xpose.msra.mxu0 0
    %267 = vmatprep.subr.bf16.mxu0 0
    %268 = vmatpush1.bf16.xpose.msra.mxu0 0
    %269 = vmatprep.subr.bf16.mxu0 0
    %270 = vmatpush1.bf16.xpose.msra.mxu0 0
    %271 = vmatprep.subr.bf16.mxu0 0
    %272 = vmatpush1.bf16.xpose.msra.mxu0 0
    %273 = vmatprep.subr.bf16.mxu0 0
    %274 = vmatpush1.bf16.xpose.msra.mxu0 0
    %275 = vmatprep.subr.bf16.mxu0 0
    %276 = vmatpush1.bf16.xpose.msra.mxu0 0
    %277 = vmatprep.subr.bf16.mxu0 0
    %278 = vmatpush1.bf16.xpose.msra.mxu0 0
    %279 = vmatprep.subr.bf16.mxu0 0
    %280 = vmatpush1.bf16.xpose.msra.mxu0 0
    %281 = vmatprep.subr.bf16.mxu0 0
    %282 = vmatpush1.bf16.xpose.msra.mxu0 0
    %283 = vmatprep.subr.bf16.mxu0 0
    %284 = vmatpush1.bf16.xpose.msra.mxu0 0
    %285 = vmatprep.subr.bf16.mxu0 0
    %286 = vmatpush1.bf16.xpose.msra.mxu0 0
    %287 = vmatprep.subr.bf16.mxu0 0
    %288 = vmatpush1.bf16.xpose.msra.mxu0 0
    %289 = vmatprep.subr.bf16.mxu0 0
    %290 = vmatpush1.bf16.xpose.msra.mxu0 0
    %291 = vmatprep.subr.bf16.mxu0 0
    %292 = vmatpush1.bf16.xpose.msra.mxu0 0
    %293 = vmatprep.subr.bf16.mxu0 0
    %294 = vmatpush1.bf16.xpose.msra.mxu0 0
    %295 = vmatprep.mubr.bf16.mxu0 0
    %296 = vmatmul.mubr.bf16.gmra.mrb[0].mxu0 %v258
    %v297 = vpop.f32.mrb[0].mxu0
    %v298 = vadd.f32 0.0, %v297
    %v299 = vpop.f32.mrb[0].mxu0
    %v300 = vpop.f32.mrb[0].mxu0
    %v301 = vpop.f32.mrb[0].mxu0
    %302 = vdwg.mxu0
    %v304 = vsel %vm256, %v251, 0
    %v307 = vsel %vm256, %v253, 0
    %309 = vmatprep.subr.bf16.mxu0 0
    %310 = vmatpush1.bf16.xpose.msra.mxu0 %v307
    %311 = vmatprep.subr.bf16.mxu0 0
    %312 = vmatpush1.bf16.xpose.msra.mxu0 0
    %313 = vmatprep.subr.bf16.mxu0 0
    %314 = vmatpush1.bf16.xpose.msra.mxu0 0
    %315 = vmatprep.subr.bf16.mxu0 0
    %316 = vmatpush1.bf16.xpose.msra.mxu0 0
    %317 = vmatprep.subr.bf16.mxu0 0
    %318 = vmatpush1.bf16.xpose.msra.mxu0 0
    %319 = vmatprep.subr.bf16.mxu0 0
    %320 = vmatpush1.bf16.xpose.msra.mxu0 0
    %321 = vmatprep.subr.bf16.mxu0 0
    %322 = vmatpush1.bf16.xpose.msra.mxu0 0
    %323 = vmatprep.subr.bf16.mxu0 0
    %324 = vmatpush1.bf16.xpose.msra.mxu0 0
    %325 = vmatprep.subr.bf16.mxu0 0
    %326 = vmatpush1.bf16.xpose.msra.mxu0 0
    %327 = vmatprep.subr.bf16.mxu0 0
    %328 = vmatpush1.bf16.xpose.msra.mxu0 0
    %329 = vmatprep.subr.bf16.mxu0 0
    %330 = vmatpush1.bf16.xpose.msra.mxu0 0
    %331 = vmatprep.subr.bf16.mxu0 0
    %332 = vmatpush1.bf16.xpose.msra.mxu0 0
    %333 = vmatprep.subr.bf16.mxu0 0
    %334 = vmatpush1.bf16.xpose.msra.mxu0 0
    %335 = vmatprep.subr.bf16.mxu0 0
    %336 = vmatpush1.bf16.xpose.msra.mxu0 0
    %337 = vmatprep.subr.bf16.mxu0 0
    %338 = vmatpush1.bf16.xpose.msra.mxu0 0
    %339 = vmatprep.subr.bf16.mxu0 0
    %340 = vmatpush1.bf16.xpose.msra.mxu0 0
    %341 = vmatprep.mubr.bf16.mxu0 0
    %342 = vmatmul.mubr.bf16.gmra.mrb[0].mxu0 %v304
    %v343 = vpop.f32.mrb[0].mxu0
    %v344 = vadd.f32 0.0, %v343
    %v345 = vpop.f32.mrb[0].mxu0
    %v346 = vpop.f32.mrb[0].mxu0
    %v347 = vpop.f32.mrb[0].mxu0
    %348 = vdwg.mxu0
    %v349 = vmul.f32 %v298, 0.35355338
    %v350 = vmul.f32 %v344, 0.35355338
    %v351 = vsel %vm256, %v349, -inf
    %352 = vmax.xlane.f32.xlu0 %v351
    %v353 = vpop.xlane.xlu0 %352
    %v354 = vsel %vm256, %v350, -inf
    %355 = vmax.xlane.f32.xlu0 %v354
    %v356 = vpop.xlane.xlu0 %355
    %v357 = vsub.f32 %v349, %v353
    %v358 = vsub.f32 %v350, %v356
    %v359 = vmul.f32 %v357, 1.442695
    %v360 = vpow.pop %v359
    %v361 = vmul.f32 %v358, 1.442695
    %v362 = vpow.pop %v361
    %v363 = vsel %vm256, %v360, 0.0
    %364 = vadd.xlane.f32.xlu0 %v363
    %v365 = vpop.xlane.xlu0 %364
    %v366 = vsel %vm256, %v362, 0.0
    %367 = vadd.xlane.f32.xlu0 %v366
    %v368 = vpop.xlane.xlu0 %367
    %v369 = vrcp.pop %v365
    %v370 = vrcp.pop %v368
    %v371 = vmul.f32 %v360, %v369
    %v372 = vmul.f32 %v362, %v370
    %v373 = vpack.c.bf16 %v371, %v371
    %v374 = vpack.c.bf16 %v372, %v372
    %v376 = vsel %vm256, %v373, 0
    %vm378 = vcmask 1043456
    %v380 = vsel %vm378, %v254, 0
    %382 = vmatprep.subr.bf16.mxu0 0
    %383 = vmatpush1.bf16.msra.mxu0 %v380
    %384 = vmatprep.subr.bf16.mxu0 0
    %385 = vmatpush1.bf16.msra.mxu0 0
    %386 = vmatprep.subr.bf16.mxu0 0
    %387 = vmatpush1.bf16.msra.mxu0 0
    %388 = vmatprep.subr.bf16.mxu0 0
    %389 = vmatpush1.bf16.msra.mxu0 0
    %390 = vmatprep.subr.bf16.mxu0 0
    %391 = vmatpush1.bf16.msra.mxu0 0
    %392 = vmatprep.subr.bf16.mxu0 0
    %393 = vmatpush1.bf16.msra.mxu0 0
    %394 = vmatprep.subr.bf16.mxu0 0
    %395 = vmatpush1.bf16.msra.mxu0 0
    %396 = vmatprep.subr.bf16.mxu0 0
    %397 = vmatpush1.bf16.msra.mxu0 0
    %398 = vmatprep.subr.bf16.mxu0 0
    %399 = vmatpush1.bf16.msra.mxu0 0
    %400 = vmatprep.subr.bf16.mxu0 0
    %401 = vmatpush1.bf16.msra.mxu0 0
    %402 = vmatprep.subr.bf16.mxu0 0
    %403 = vmatpush1.bf16.msra.mxu0 0
    %404 = vmatprep.subr.bf16.mxu0 0
    %405 = vmatpush1.bf16.msra.mxu0 0
    %406 = vmatprep.subr.bf16.mxu0 0
    %407 = vmatpush1.bf16.msra.mxu0 0
    %408 = vmatprep.subr.bf16.mxu0 0
    %409 = vmatpush1.bf16.msra.mxu0 0
    %410 = vmatprep.subr.bf16.mxu0 0
    %411 = vmatpush1.bf16.msra.mxu0 0
    %412 = vmatprep.subr.bf16.mxu0 0
    %413 = vmatpush1.bf16.msra.mxu0 0
    %414 = vmatprep.mubr.bf16.mxu0 0
    %415 = vmatmul.mubr.bf16.gmra.mrb[0].mxu0 %v376
    %v416 = vpop.f32.mrb[0].mxu0
    %v417 = vadd.f32 0.0, %v416
    %v418 = vpop.f32.mrb[0].mxu0
    %v419 = vpop.f32.mrb[0].mxu0
    %v420 = vpop.f32.mrb[0].mxu0
    %421 = vdwg.mxu0
    %v423 = vsel %vm256, %v374, 0
    %v426 = vsel %vm378, %v255, 0
    %428 = vmatprep.subr.bf16.mxu0 0
    %429 = vmatpush1.bf16.msra.mxu0 %v426
    %430 = vmatprep.subr.bf16.mxu0 0
    %431 = vmatpush1.bf16.msra.mxu0 0
    %432 = vmatprep.subr.bf16.mxu0 0
    %433 = vmatpush1.bf16.msra.mxu0 0
    %434 = vmatprep.subr.bf16.mxu0 0
    %435 = vmatpush1.bf16.msra.mxu0 0
    %436 = vmatprep.subr.bf16.mxu0 0
    %437 = vmatpush1.bf16.msra.mxu0 0
    %438 = vmatprep.subr.bf16.mxu0 0
    %439 = vmatpush1.bf16.msra.mxu0 0
    %440 = vmatprep.subr.bf16.mxu0 0
    %441 = vmatpush1.bf16.msra.mxu0 0
    %442 = vmatprep.subr.bf16.mxu0 0
    %443 = vmatpush1.bf16.msra.mxu0 0
    %444 = vmatprep.subr.bf16.mxu0 0
    %445 = vmatpush1.bf16.msra.mxu0 0
    %446 = vmatprep.subr.bf16.mxu0 0
    %447 = vmatpush1.bf16.msra.mxu0 0
    %448 = vmatprep.subr.bf16.mxu0 0
    %449 = vmatpush1.bf16.msra.mxu0 0
    %450 = vmatprep.subr.bf16.mxu0 0
    %451 = vmatpush1.bf16.msra.mxu0 0
    %452 = vmatprep.subr.bf16.mxu0 0
    %453 = vmatpush1.bf16.msra.mxu0 0
    %454 = vmatprep.subr.bf16.mxu0 0
    %455 = vmatpush1.bf16.msra.mxu0 0
    %456 = vmatprep.subr.bf16.mxu0 0
    %457 = vmatpush1.bf16.msra.mxu0 0
    %458 = vmatprep.subr.bf16.mxu0 0
    %459 = vmatpush1.bf16.msra.mxu0 0
    %460 = vmatprep.mubr.bf16.mxu0 0
    %461 = vmatmul.mubr.bf16.gmra.mrb[0].mxu0 %v423
    %v462 = vpop.f32.mrb[0].mxu0
    %v463 = vadd.f32 0.0, %v462
    %v464 = vpop.f32.mrb[0].mxu0
    %v465 = vpop.f32.mrb[0].mxu0
    %v466 = vpop.f32.mrb[0].mxu0
    %467 = vdwg.mxu0
    %v468 = vpack.c.bf16 %v463, %v417
    %v469 = vld [vmem:[%s4] sm:$0xf]
    %v471 = vsel %vm256, %v468, 0
    %v474 = vsel %vm378, %v469, 0
    %476 = vmatprep.subr.bf16.mxu0 0
    %477 = vmatpush1.bf16.msra.mxu0 %v474
    %478 = vmatprep.subr.bf16.mxu0 0
    %479 = vmatpush1.bf16.msra.mxu0 0
    %480 = vmatprep.subr.bf16.mxu0 0
    %481 = vmatpush1.bf16.msra.mxu0 0
    %482 = vmatprep.subr.bf16.mxu0 0
    %483 = vmatpush1.bf16.msra.mxu0 0
    %484 = vmatprep.subr.bf16.mxu0 0
    %485 = vmatpush1.bf16.msra.mxu0 0
    %486 = vmatprep.subr.bf16.mxu0 0
    %487 = vmatpush1.bf16.msra.mxu0 0
    %488 = vmatprep.subr.bf16.mxu0 0
    %489 = vmatpush1.bf16.msra.mxu0 0
    %490 = vmatprep.subr.bf16.mxu0 0
    %491 = vmatpush1.bf16.msra.mxu0 0
    %492 = vmatprep.subr.bf16.mxu0 0
    %493 = vmatpush1.bf16.msra.mxu0 0
    %494 = vmatprep.subr.bf16.mxu0 0
    %495 = vmatpush1.bf16.msra.mxu0 0
    %496 = vmatprep.subr.bf16.mxu0 0
    %497 = vmatpush1.bf16.msra.mxu0 0
    %498 = vmatprep.subr.bf16.mxu0 0
    %499 = vmatpush1.bf16.msra.mxu0 0
    %500 = vmatprep.subr.bf16.mxu0 0
    %501 = vmatpush1.bf16.msra.mxu0 0
    %502 = vmatprep.subr.bf16.mxu0 0
    %503 = vmatpush1.bf16.msra.mxu0 0
    %504 = vmatprep.subr.bf16.mxu0 0
    %505 = vmatpush1.bf16.msra.mxu0 0
    %506 = vmatprep.subr.bf16.mxu0 0
    %507 = vmatpush1.bf16.msra.mxu0 0
    %508 = vmatprep.mubr.bf16.mxu0 0
    %509 = vmatmul.mubr.bf16.gmra.mrb[0].mxu0 %v471
    %v510 = vpop.f32.mrb[0].mxu0
    %v511 = vadd.f32 0.0, %v510
    %v512 = vpop.f32.mrb[0].mxu0
    %v513 = vpop.f32.mrb[0].mxu0
    %v514 = vadd.f32 0.0, %v513
    %v515 = vpop.f32.mrb[0].mxu0
    %516 = vdwg.mxu0
    %v517 = vadd.f32 %v46, %v511
    %v518 = vadd.f32 %v46, %v514
    %s519 = scalar_lea.vmem %s2, 16
    %v520 = vld [vmem:[%s519] sm:$0xf]
    %v521 = vld [vmem:[%s519 + $0x4] sm:$0xf]
    %v522 = vld [vmem:[%s519 + $0x8] sm:$0xf]
    %v523 = vld [vmem:[%s519 + $0xc] sm:$0xf]
    %s524 = scalar_lea.vmem %s3, 1
    %v525 = vld [vmem:[%s524] sm:$0x1]
    %v527 = vlaneseq
    %v528 = vshrl.u32 %v527, 7
    %v529 = vsub.s32 0, %v528
    %v530 = vrot.slane %v525, %v529
    %v536 = vunpack.c.l.b16 %v520
    %v537 = vunpack.c.l.b16 %v521
    %v538 = vunpack.c.l.b16 %v522
    %v539 = vunpack.c.l.b16 %v523
    %v540 = vpack.c.b16 %v537, %v536
    %v541 = vpack.c.b16 %v539, %v538
    %544 = vmatprep.subr.bf16.mxu0 0
    %545 = vmatpush1.bf16.msra.mxu0 %v540
    %546 = vmatprep.subr.bf16.mxu0 0
    %547 = vmatpush1.bf16.msra.mxu0 %v541
    %548 = vmatprep.subr.bf16.mxu0 0
    %549 = vmatpush1.bf16.msra.mxu0 0
    %550 = vmatprep.subr.bf16.mxu0 0
    %551 = vmatpush1.bf16.msra.mxu0 0
    %552 = vmatprep.subr.bf16.mxu0 0
    %553 = vmatpush1.bf16.msra.mxu0 0
    %554 = vmatprep.subr.bf16.mxu0 0
    %555 = vmatpush1.bf16.msra.mxu0 0
    %556 = vmatprep.subr.bf16.mxu0 0
    %557 = vmatpush1.bf16.msra.mxu0 0
    %558 = vmatprep.subr.bf16.mxu0 0
    %559 = vmatpush1.bf16.msra.mxu0 0
    %560 = vmatprep.subr.bf16.mxu0 0
    %561 = vmatpush1.bf16.msra.mxu0 0
    %562 = vmatprep.subr.bf16.mxu0 0
    %563 = vmatpush1.bf16.msra.mxu0 0
    %564 = vmatprep.subr.bf16.mxu0 0
    %565 = vmatpush1.bf16.msra.mxu0 0
    %566 = vmatprep.subr.bf16.mxu0 0
    %567 = vmatpush1.bf16.msra.mxu0 0
    %568 = vmatprep.subr.bf16.mxu0 0
    %569 = vmatpush1.bf16.msra.mxu0 0
    %570 = vmatprep.subr.bf16.mxu0 0
    %571 = vmatpush1.bf16.msra.mxu0 0
    %572 = vmatprep.subr.bf16.mxu0 0
    %573 = vmatpush1.bf16.msra.mxu0 0
    %574 = vmatprep.subr.bf16.mxu0 0
    %575 = vmatpush1.bf16.msra.mxu0 0
    %576 = vmatprep.mubr.bf16.mxu0 0
    %577 = vmatmul.mubr.bf16.gmra.mrb[0].mxu0 %v72
    %v578 = vpop.f32.mrb[0].mxu0
    %v579 = vadd.f32 %v530, %v578
    %v580 = vpop.f32.mrb[0].mxu0
    %v581 = vpop.f32.mrb[0].mxu0
    %v582 = vadd.f32 %v530, %v581
    %v583 = vpop.f32.mrb[0].mxu0
    %584 = vdwg.mxu0
    %s585 = scalar_lea.vmem %s2, 80
    %v586 = vld [vmem:[%s585] sm:$0xf]
    %v587 = vld [vmem:[%s585 + $0x4] sm:$0xf]
    %v588 = vld [vmem:[%s585 + $0x8] sm:$0xf]
    %v589 = vld [vmem:[%s585 + $0xc] sm:$0xf]
    %s590 = scalar_lea.vmem %s3, 5
    %v591 = vld [vmem:[%s590] sm:$0x1]
    %v593 = vlaneseq
    %v594 = vshrl.u32 %v593, 7
    %v595 = vsub.s32 0, %v594
    %v596 = vrot.slane %v591, %v595
    %v602 = vunpack.c.l.b16 %v586
    %v603 = vunpack.c.l.b16 %v587
    %v604 = vunpack.c.l.b16 %v588
    %v605 = vunpack.c.l.b16 %v589
    %v606 = vpack.c.b16 %v603, %v602
    %v607 = vpack.c.b16 %v605, %v604
    %610 = vmatprep.subr.bf16.mxu0 0
    %611 = vmatpush1.bf16.msra.mxu0 %v606
    %612 = vmatprep.subr.bf16.mxu0 0
    %613 = vmatpush1.bf16.msra.mxu0 %v607
    %614 = vmatprep.subr.bf16.mxu0 0
    %615 = vmatpush1.bf16.msra.mxu0 0
    %616 = vmatprep.subr.bf16.mxu0 0
    %617 = vmatpush1.bf16.msra.mxu0 0
    %618 = vmatprep.subr.bf16.mxu0 0
    %619 = vmatpush1.bf16.msra.mxu0 0
    %620 = vmatprep.subr.bf16.mxu0 0
    %621 = vmatpush1.bf16.msra.mxu0 0
    %622 = vmatprep.subr.bf16.mxu0 0
    %623 = vmatpush1.bf16.msra.mxu0 0
    %624 = vmatprep.subr.bf16.mxu0 0
    %625 = vmatpush1.bf16.msra.mxu0 0
    %626 = vmatprep.subr.bf16.mxu0 0
    %627 = vmatpush1.bf16.msra.mxu0 0
    %628 = vmatprep.subr.bf16.mxu0 0
    %629 = vmatpush1.bf16.msra.mxu0 0
    %630 = vmatprep.subr.bf16.mxu0 0
    %631 = vmatpush1.bf16.msra.mxu0 0
    %632 = vmatprep.subr.bf16.mxu0 0
    %633 = vmatpush1.bf16.msra.mxu0 0
    %634 = vmatprep.subr.bf16.mxu0 0
    %635 = vmatpush1.bf16.msra.mxu0 0
    %636 = vmatprep.subr.bf16.mxu0 0
    %637 = vmatpush1.bf16.msra.mxu0 0
    %638 = vmatprep.subr.bf16.mxu0 0
    %639 = vmatpush1.bf16.msra.mxu0 0
    %640 = vmatprep.subr.bf16.mxu0 0
    %641 = vmatpush1.bf16.msra.mxu0 0
    %642 = vmatprep.mubr.bf16.mxu0 0
    %643 = vmatmul.mubr.bf16.gmra.mrb[0].mxu0 %v72
    %v644 = vpop.f32.mrb[0].mxu0
    %v645 = vadd.f32 %v596, %v644
    %v646 = vpop.f32.mrb[0].mxu0
    %v647 = vpop.f32.mrb[0].mxu0
    %v648 = vadd.f32 %v596, %v647
    %v649 = vpop.f32.mrb[0].mxu0
    %650 = vdwg.mxu0
    %s651 = scalar_lea.vmem %s2, 144
    %v652 = vld [vmem:[%s651] sm:$0xf]
    %v653 = vld [vmem:[%s651 + $0x4] sm:$0xf]
    %v654 = vld [vmem:[%s651 + $0x8] sm:$0xf]
    %v655 = vld [vmem:[%s651 + $0xc] sm:$0xf]
    %s656 = scalar_lea.vmem %s3, 9
    %v657 = vld [vmem:[%s656] sm:$0x1]
    %v659 = vlaneseq
    %v660 = vshrl.u32 %v659, 7
    %v661 = vsub.s32 0, %v660
    %v662 = vrot.slane %v657, %v661
    %v668 = vunpack.c.l.b16 %v652
    %v669 = vunpack.c.l.b16 %v653
    %v670 = vunpack.c.l.b16 %v654
    %v671 = vunpack.c.l.b16 %v655
    %v672 = vpack.c.b16 %v669, %v668
    %v673 = vpack.c.b16 %v671, %v670
    %676 = vmatprep.subr.bf16.mxu0 0
    %677 = vmatpush1.bf16.msra.mxu0 %v672
    %678 = vmatprep.subr.bf16.mxu0 0
    %679 = vmatpush1.bf16.msra.mxu0 %v673
    %680 = vmatprep.subr.bf16.mxu0 0
    %681 = vmatpush1.bf16.msra.mxu0 0
    %682 = vmatprep.subr.bf16.mxu0 0
    %683 = vmatpush1.bf16.msra.mxu0 0
    %684 = vmatprep.subr.bf16.mxu0 0
    %685 = vmatpush1.bf16.msra.mxu0 0
    %686 = vmatprep.subr.bf16.mxu0 0
    %687 = vmatpush1.bf16.msra.mxu0 0
    %688 = vmatprep.subr.bf16.mxu0 0
    %689 = vmatpush1.bf16.msra.mxu0 0
    %690 = vmatprep.subr.bf16.mxu0 0
    %691 = vmatpush1.bf16.msra.mxu0 0
    %692 = vmatprep.subr.bf16.mxu0 0
    %693 = vmatpush1.bf16.msra.mxu0 0
    %694 = vmatprep.subr.bf16.mxu0 0
    %695 = vmatpush1.bf16.msra.mxu0 0
    %696 = vmatprep.subr.bf16.mxu0 0
    %697 = vmatpush1.bf16.msra.mxu0 0
    %698 = vmatprep.subr.bf16.mxu0 0
    %699 = vmatpush1.bf16.msra.mxu0 0
    %700 = vmatprep.subr.bf16.mxu0 0
    %701 = vmatpush1.bf16.msra.mxu0 0
    %702 = vmatprep.subr.bf16.mxu0 0
    %703 = vmatpush1.bf16.msra.mxu0 0
    %704 = vmatprep.subr.bf16.mxu0 0
    %705 = vmatpush1.bf16.msra.mxu0 0
    %706 = vmatprep.subr.bf16.mxu0 0
    %707 = vmatpush1.bf16.msra.mxu0 0
    %708 = vmatprep.mubr.bf16.mxu0 0
    %709 = vmatmul.mubr.bf16.gmra.mrb[0].mxu0 %v207
    %v710 = vpop.f32.mrb[0].mxu0
    %v711 = vadd.f32 %v662, %v710
    %v712 = vpop.f32.mrb[0].mxu0
    %v713 = vpop.f32.mrb[0].mxu0
    %v714 = vadd.f32 %v662, %v713
    %v715 = vpop.f32.mrb[0].mxu0
    %716 = vdwg.mxu0
    %v717 = vpack.c.bf16 %v579, %v579
    %v718 = vpack.c.bf16 %v582, %v582
    %v719 = vpack.c.bf16 %v645, %v645
    %v720 = vpack.c.bf16 %v648, %v648
    %v721 = vpack.c.bf16 %v711, %v711
    %v722 = vpack.c.bf16 %v714, %v714
    %v724 = vsel %vm256, %v717, 0
    %v727 = vsel %vm256, %v719, 0
    %729 = vmatprep.subr.bf16.mxu0 0
    %730 = vmatpush1.bf16.xpose.msra.mxu0 %v727
    %731 = vmatprep.subr.bf16.mxu0 0
    %732 = vmatpush1.bf16.xpose.msra.mxu0 0
    %733 = vmatprep.subr.bf16.mxu0 0
    %734 = vmatpush1.bf16.xpose.msra.mxu0 0
    %735 = vmatprep.subr.bf16.mxu0 0
    %736 = vmatpush1.bf16.xpose.msra.mxu0 0
    %737 = vmatprep.subr.bf16.mxu0 0
    %738 = vmatpush1.bf16.xpose.msra.mxu0 0
    %739 = vmatprep.subr.bf16.mxu0 0
    %740 = vmatpush1.bf16.xpose.msra.mxu0 0
    %741 = vmatprep.subr.bf16.mxu0 0
    %742 = vmatpush1.bf16.xpose.msra.mxu0 0
    %743 = vmatprep.subr.bf16.mxu0 0
    %744 = vmatpush1.bf16.xpose.msra.mxu0 0
    %745 = vmatprep.subr.bf16.mxu0 0
    %746 = vmatpush1.bf16.xpose.msra.mxu0 0
    %747 = vmatprep.subr.bf16.mxu0 0
    %748 = vmatpush1.bf16.xpose.msra.mxu0 0
    %749 = vmatprep.subr.bf16.mxu0 0
    %750 = vmatpush1.bf16.xpose.msra.mxu0 0
    %751 = vmatprep.subr.bf16.mxu0 0
    %752 = vmatpush1.bf16.xpose.msra.mxu0 0
    %753 = vmatprep.subr.bf16.mxu0 0
    %754 = vmatpush1.bf16.xpose.msra.mxu0 0
    %755 = vmatprep.subr.bf16.mxu0 0
    %756 = vmatpush1.bf16.xpose.msra.mxu0 0
    %757 = vmatprep.subr.bf16.mxu0 0
    %758 = vmatpush1.bf16.xpose.msra.mxu0 0
    %759 = vmatprep.subr.bf16.mxu0 0
    %760 = vmatpush1.bf16.xpose.msra.mxu0 0
    %761 = vmatprep.mubr.bf16.mxu0 0
    %762 = vmatmul.mubr.bf16.gmra.mrb[0].mxu0 %v724
    %v763 = vpop.f32.mrb[0].mxu0
    %v764 = vadd.f32 0.0, %v763
    %v765 = vpop.f32.mrb[0].mxu0
    %v766 = vpop.f32.mrb[0].mxu0
    %v767 = vpop.f32.mrb[0].mxu0
    %768 = vdwg.mxu0
    %v770 = vsel %vm256, %v718, 0
    %v773 = vsel %vm256, %v720, 0
    %775 = vmatprep.subr.bf16.mxu0 0
    %776 = vmatpush1.bf16.xpose.msra.mxu0 %v773
    %777 = vmatprep.subr.bf16.mxu0 0
    %778 = vmatpush1.bf16.xpose.msra.mxu0 0
    %779 = vmatprep.subr.bf16.mxu0 0
    %780 = vmatpush1.bf16.xpose.msra.mxu0 0
    %781 = vmatprep.subr.bf16.mxu0 0
    %782 = vmatpush1.bf16.xpose.msra.mxu0 0
    %783 = vmatprep.subr.bf16.mxu0 0
    %784 = vmatpush1.bf16.xpose.msra.mxu0 0
    %785 = vmatprep.subr.bf16.mxu0 0
    %786 = vmatpush1.bf16.xpose.msra.mxu0 0
    %787 = vmatprep.subr.bf16.mxu0 0
    %788 = vmatpush1.bf16.xpose.msra.mxu0 0
    %789 = vmatprep.subr.bf16.mxu0 0
    %790 = vmatpush1.bf16.xpose.msra.mxu0 0
    %791 = vmatprep.subr.bf16.mxu0 0
    %792 = vmatpush1.bf16.xpose.msra.mxu0 0
    %793 = vmatprep.subr.bf16.mxu0 0
    %794 = vmatpush1.bf16.xpose.msra.mxu0 0
    %795 = vmatprep.subr.bf16.mxu0 0
    %796 = vmatpush1.bf16.xpose.msra.mxu0 0
    %797 = vmatprep.subr.bf16.mxu0 0
    %798 = vmatpush1.bf16.xpose.msra.mxu0 0
    %799 = vmatprep.subr.bf16.mxu0 0
    %800 = vmatpush1.bf16.xpose.msra.mxu0 0
    %801 = vmatprep.subr.bf16.mxu0 0
    %802 = vmatpush1.bf16.xpose.msra.mxu0 0
    %803 = vmatprep.subr.bf16.mxu0 0
    %804 = vmatpush1.bf16.xpose.msra.mxu0 0
    %805 = vmatprep.subr.bf16.mxu0 0
    %806 = vmatpush1.bf16.xpose.msra.mxu0 0
    %807 = vmatprep.mubr.bf16.mxu0 0
    %808 = vmatmul.mubr.bf16.gmra.mrb[0].mxu0 %v770
    %v809 = vpop.f32.mrb[0].mxu0
    %v810 = vadd.f32 0.0, %v809
    %v811 = vpop.f32.mrb[0].mxu0
    %v812 = vpop.f32.mrb[0].mxu0
    %v813 = vpop.f32.mrb[0].mxu0
    %814 = vdwg.mxu0
    %v815 = vmul.f32 %v764, 0.35355338
    %v816 = vmul.f32 %v810, 0.35355338
    %v817 = vsel %vm256, %v815, -inf
    %818 = vmax.xlane.f32.xlu0 %v817
    %v819 = vpop.xlane.xlu0 %818
    %v820 = vsel %vm256, %v816, -inf
    %821 = vmax.xlane.f32.xlu0 %v820
    %v822 = vpop.xlane.xlu0 %821
    %v823 = vsub.f32 %v815, %v819
    %v824 = vsub.f32 %v816, %v822
    %v825 = vmul.f32 %v823, 1.442695
    %v826 = vpow.pop %v825
    %v827 = vmul.f32 %v824, 1.442695
    %v828 = vpow.pop %v827
    %v829 = vsel %vm256, %v826, 0.0
    %830 = vadd.xlane.f32.xlu0 %v829
    %v831 = vpop.xlane.xlu0 %830
    %v832 = vsel %vm256, %v828, 0.0
    %833 = vadd.xlane.f32.xlu0 %v832
    %v834 = vpop.xlane.xlu0 %833
    %v835 = vrcp.pop %v831
    %v836 = vrcp.pop %v834
    %v837 = vmul.f32 %v826, %v835
    %v838 = vmul.f32 %v828, %v836
    %v839 = vpack.c.bf16 %v837, %v837
    %v840 = vpack.c.bf16 %v838, %v838
    %v842 = vsel %vm256, %v839, 0
    %v845 = vsel %vm378, %v721, 0
    %847 = vmatprep.subr.bf16.mxu0 0
    %848 = vmatpush1.bf16.msra.mxu0 %v845
    %849 = vmatprep.subr.bf16.mxu0 0
    %850 = vmatpush1.bf16.msra.mxu0 0
    %851 = vmatprep.subr.bf16.mxu0 0
    %852 = vmatpush1.bf16.msra.mxu0 0
    %853 = vmatprep.subr.bf16.mxu0 0
    %854 = vmatpush1.bf16.msra.mxu0 0
    %855 = vmatprep.subr.bf16.mxu0 0
    %856 = vmatpush1.bf16.msra.mxu0 0
    %857 = vmatprep.subr.bf16.mxu0 0
    %858 = vmatpush1.bf16.msra.mxu0 0
    %859 = vmatprep.subr.bf16.mxu0 0
    %860 = vmatpush1.bf16.msra.mxu0 0
    %861 = vmatprep.subr.bf16.mxu0 0
    %862 = vmatpush1.bf16.msra.mxu0 0
    %863 = vmatprep.subr.bf16.mxu0 0
    %864 = vmatpush1.bf16.msra.mxu0 0
    %865 = vmatprep.subr.bf16.mxu0 0
    %866 = vmatpush1.bf16.msra.mxu0 0
    %867 = vmatprep.subr.bf16.mxu0 0
    %868 = vmatpush1.bf16.msra.mxu0 0
    %869 = vmatprep.subr.bf16.mxu0 0
    %870 = vmatpush1.bf16.msra.mxu0 0
    %871 = vmatprep.subr.bf16.mxu0 0
    %872 = vmatpush1.bf16.msra.mxu0 0
    %873 = vmatprep.subr.bf16.mxu0 0
    %874 = vmatpush1.bf16.msra.mxu0 0
    %875 = vmatprep.subr.bf16.mxu0 0
    %876 = vmatpush1.bf16.msra.mxu0 0
    %877 = vmatprep.subr.bf16.mxu0 0
    %878 = vmatpush1.bf16.msra.mxu0 0
    %879 = vmatprep.mubr.bf16.mxu0 0
    %880 = vmatmul.mubr.bf16.gmra.mrb[0].mxu0 %v842
    %v881 = vpop.f32.mrb[0].mxu0
    %v882 = vadd.f32 0.0, %v881
    %v883 = vpop.f32.mrb[0].mxu0
    %v884 = vpop.f32.mrb[0].mxu0
    %v885 = vpop.f32.mrb[0].mxu0
    %886 = vdwg.mxu0
    %v888 = vsel %vm256, %v840, 0
    %v891 = vsel %vm378, %v722, 0
    %893 = vmatprep.subr.bf16.mxu0 0
    %894 = vmatpush1.bf16.msra.mxu0 %v891
    %895 = vmatprep.subr.bf16.mxu0 0
    %896 = vmatpush1.bf16.msra.mxu0 0
    %897 = vmatprep.subr.bf16.mxu0 0
    %898 = vmatpush1.bf16.msra.mxu0 0
    %899 = vmatprep.subr.bf16.mxu0 0
    %900 = vmatpush1.bf16.msra.mxu0 0
    %901 = vmatprep.subr.bf16.mxu0 0
    %902 = vmatpush1.bf16.msra.mxu0 0
    %903 = vmatprep.subr.bf16.mxu0 0
    %904 = vmatpush1.bf16.msra.mxu0 0
    %905 = vmatprep.subr.bf16.mxu0 0
    %906 = vmatpush1.bf16.msra.mxu0 0
    %907 = vmatprep.subr.bf16.mxu0 0
    %908 = vmatpush1.bf16.msra.mxu0 0
    %909 = vmatprep.subr.bf16.mxu0 0
    %910 = vmatpush1.bf16.msra.mxu0 0
    %911 = vmatprep.subr.bf16.mxu0 0
    %912 = vmatpush1.bf16.msra.mxu0 0
    %913 = vmatprep.subr.bf16.mxu0 0
    %914 = vmatpush1.bf16.msra.mxu0 0
    %915 = vmatprep.subr.bf16.mxu0 0
    %916 = vmatpush1.bf16.msra.mxu0 0
    %917 = vmatprep.subr.bf16.mxu0 0
    %918 = vmatpush1.bf16.msra.mxu0 0
    %919 = vmatprep.subr.bf16.mxu0 0
    %920 = vmatpush1.bf16.msra.mxu0 0
    %921 = vmatprep.subr.bf16.mxu0 0
    %922 = vmatpush1.bf16.msra.mxu0 0
    %923 = vmatprep.subr.bf16.mxu0 0
    %924 = vmatpush1.bf16.msra.mxu0 0
    %925 = vmatprep.mubr.bf16.mxu0 0
    %926 = vmatmul.mubr.bf16.gmra.mrb[0].mxu0 %v888
    %v927 = vpop.f32.mrb[0].mxu0
    %v928 = vadd.f32 0.0, %v927
    %v929 = vpop.f32.mrb[0].mxu0
    %v930 = vpop.f32.mrb[0].mxu0
    %v931 = vpop.f32.mrb[0].mxu0
    %932 = vdwg.mxu0
    %v933 = vpack.c.bf16 %v928, %v882
    %s934 = scalar_lea.vmem %s4, 4
    %v935 = vld [vmem:[%s934] sm:$0xf]
    %v937 = vsel %vm256, %v933, 0
    %v940 = vsel %vm378, %v935, 0
    %942 = vmatprep.subr.bf16.mxu0 0
    %943 = vmatpush1.bf16.msra.mxu0 %v940
    %944 = vmatprep.subr.bf16.mxu0 0
    %945 = vmatpush1.bf16.msra.mxu0 0
    %946 = vmatprep.subr.bf16.mxu0 0
    %947 = vmatpush1.bf16.msra.mxu0 0
    %948 = vmatprep.subr.bf16.mxu0 0
    %949 = vmatpush1.bf16.msra.mxu0 0
    %950 = vmatprep.subr.bf16.mxu0 0
    %951 = vmatpush1.bf16.msra.mxu0 0
    %952 = vmatprep.subr.bf16.mxu0 0
    %953 = vmatpush1.bf16.msra.mxu0 0
    %954 = vmatprep.subr.bf16.mxu0 0
    %955 = vmatpush1.bf16.msra.mxu0 0
    %956 = vmatprep.subr.bf16.mxu0 0
    %957 = vmatpush1.bf16.msra.mxu0 0
    %958 = vmatprep.subr.bf16.mxu0 0
    %959 = vmatpush1.bf16.msra.mxu0 0
    %960 = vmatprep.subr.bf16.mxu0 0
    %961 = vmatpush1.bf16.msra.mxu0 0
    %962 = vmatprep.subr.bf16.mxu0 0
    %963 = vmatpush1.bf16.msra.mxu0 0
    %964 = vmatprep.subr.bf16.mxu0 0
    %965 = vmatpush1.bf16.msra.mxu0 0
    %966 = vmatprep.subr.bf16.mxu0 0
    %967 = vmatpush1.bf16.msra.mxu0 0
    %968 = vmatprep.subr.bf16.mxu0 0
    %969 = vmatpush1.bf16.msra.mxu0 0
    %970 = vmatprep.subr.bf16.mxu0 0
    %971 = vmatpush1.bf16.msra.mxu0 0
    %972 = vmatprep.subr.bf16.mxu0 0
    %973 = vmatpush1.bf16.msra.mxu0 0
    %974 = vmatprep.mubr.bf16.mxu0 0
    %975 = vmatmul.mubr.bf16.gmra.mrb[0].mxu0 %v937
    %v976 = vpop.f32.mrb[0].mxu0
    %v977 = vadd.f32 0.0, %v976
    %v978 = vpop.f32.mrb[0].mxu0
    %v979 = vpop.f32.mrb[0].mxu0
    %v980 = vadd.f32 0.0, %v979
    %v981 = vpop.f32.mrb[0].mxu0
    %982 = vdwg.mxu0
    %v983 = vadd.f32 %v517, %v977
    %v984 = vadd.f32 %v518, %v980
    %s985 = scalar_lea.vmem %s2, 32
    %v986 = vld [vmem:[%s985] sm:$0xf]
    %v987 = vld [vmem:[%s985 + $0x4] sm:$0xf]
    %v988 = vld [vmem:[%s985 + $0x8] sm:$0xf]
    %v989 = vld [vmem:[%s985 + $0xc] sm:$0xf]
    %s990 = scalar_lea.vmem %s3, 2
    %v991 = vld [vmem:[%s990] sm:$0x1]
    %v993 = vlaneseq
    %v994 = vshrl.u32 %v993, 7
    %v995 = vsub.s32 0, %v994
    %v996 = vrot.slane %v991, %v995
    %v1002 = vunpack.c.l.b16 %v986
    %v1003 = vunpack.c.l.b16 %v987
    %v1004 = vunpack.c.l.b16 %v988
    %v1005 = vunpack.c.l.b16 %v989
    %v1006 = vpack.c.b16 %v1003, %v1002
    %v1007 = vpack.c.b16 %v1005, %v1004
    %1010 = vmatprep.subr.bf16.mxu0 0
    %1011 = vmatpush1.bf16.msra.mxu0 %v1006
    %1012 = vmatprep.subr.bf16.mxu0 0
    %1013 = vmatpush1.bf16.msra.mxu0 %v1007
    %1014 = vmatprep.subr.bf16.mxu0 0
    %1015 = vmatpush1.bf16.msra.mxu0 0
    %1016 = vmatprep.subr.bf16.mxu0 0
    %1017 = vmatpush1.bf16.msra.mxu0 0
    %1018 = vmatprep.subr.bf16.mxu0 0
    %1019 = vmatpush1.bf16.msra.mxu0 0
    %1020 = vmatprep.subr.bf16.mxu0 0
    %1021 = vmatpush1.bf16.msra.mxu0 0
    %1022 = vmatprep.subr.bf16.mxu0 0
    %1023 = vmatpush1.bf16.msra.mxu0 0
    %1024 = vmatprep.subr.bf16.mxu0 0
    %1025 = vmatpush1.bf16.msra.mxu0 0
    %1026 = vmatprep.subr.bf16.mxu0 0
    %1027 = vmatpush1.bf16.msra.mxu0 0
    %1028 = vmatprep.subr.bf16.mxu0 0
    %1029 = vmatpush1.bf16.msra.mxu0 0
    %1030 = vmatprep.subr.bf16.mxu0 0
    %1031 = vmatpush1.bf16.msra.mxu0 0
    %1032 = vmatprep.subr.bf16.mxu0 0
    %1033 = vmatpush1.bf16.msra.mxu0 0
    %1034 = vmatprep.subr.bf16.mxu0 0
    %1035 = vmatpush1.bf16.msra.mxu0 0
    %1036 = vmatprep.subr.bf16.mxu0 0
    %1037 = vmatpush1.bf16.msra.mxu0 0
    %1038 = vmatprep.subr.bf16.mxu0 0
    %1039 = vmatpush1.bf16.msra.mxu0 0
    %1040 = vmatprep.subr.bf16.mxu0 0
    %1041 = vmatpush1.bf16.msra.mxu0 0
    %1042 = vmatprep.mubr.bf16.mxu0 0
    %1043 = vmatmul.mubr.bf16.gmra.mrb[0].mxu0 %v72
    %v1044 = vpop.f32.mrb[0].mxu0
    %v1045 = vadd.f32 %v996, %v1044
    %v1046 = vpop.f32.mrb[0].mxu0
    %v1047 = vpop.f32.mrb[0].mxu0
    %v1048 = vadd.f32 %v996, %v1047
    %v1049 = vpop.f32.mrb[0].mxu0
    %1050 = vdwg.mxu0
    %s1051 = scalar_lea.vmem %s2, 96
    %v1052 = vld [vmem:[%s1051] sm:$0xf]
    %v1053 = vld [vmem:[%s1051 + $0x4] sm:$0xf]
    %v1054 = vld [vmem:[%s1051 + $0x8] sm:$0xf]
    %v1055 = vld [vmem:[%s1051 + $0xc] sm:$0xf]
    %s1056 = scalar_lea.vmem %s3, 6
    %v1057 = vld [vmem:[%s1056] sm:$0x1]
    %v1059 = vlaneseq
    %v1060 = vshrl.u32 %v1059, 7
    %v1061 = vsub.s32 0, %v1060
    %v1062 = vrot.slane %v1057, %v1061
    %v1068 = vunpack.c.l.b16 %v1052
    %v1069 = vunpack.c.l.b16 %v1053
    %v1070 = vunpack.c.l.b16 %v1054
    %v1071 = vunpack.c.l.b16 %v1055
    %v1072 = vpack.c.b16 %v1069, %v1068
    %v1073 = vpack.c.b16 %v1071, %v1070
    %1076 = vmatprep.subr.bf16.mxu0 0
    %1077 = vmatpush1.bf16.msra.mxu0 %v1072
    %1078 = vmatprep.subr.bf16.mxu0 0
    %1079 = vmatpush1.bf16.msra.mxu0 %v1073
    %1080 = vmatprep.subr.bf16.mxu0 0
    %1081 = vmatpush1.bf16.msra.mxu0 0
    %1082 = vmatprep.subr.bf16.mxu0 0
    %1083 = vmatpush1.bf16.msra.mxu0 0
    %1084 = vmatprep.subr.bf16.mxu0 0
    %1085 = vmatpush1.bf16.msra.mxu0 0
    %1086 = vmatprep.subr.bf16.mxu0 0
    %1087 = vmatpush1.bf16.msra.mxu0 0
    %1088 = vmatprep.subr.bf16.mxu0 0
    %1089 = vmatpush1.bf16.msra.mxu0 0
    %1090 = vmatprep.subr.bf16.mxu0 0
    %1091 = vmatpush1.bf16.msra.mxu0 0
    %1092 = vmatprep.subr.bf16.mxu0 0
    %1093 = vmatpush1.bf16.msra.mxu0 0
    %1094 = vmatprep.subr.bf16.mxu0 0
    %1095 = vmatpush1.bf16.msra.mxu0 0
    %1096 = vmatprep.subr.bf16.mxu0 0
    %1097 = vmatpush1.bf16.msra.mxu0 0
    %1098 = vmatprep.subr.bf16.mxu0 0
    %1099 = vmatpush1.bf16.msra.mxu0 0
    %1100 = vmatprep.subr.bf16.mxu0 0
    %1101 = vmatpush1.bf16.msra.mxu0 0
    %1102 = vmatprep.subr.bf16.mxu0 0
    %1103 = vmatpush1.bf16.msra.mxu0 0
    %1104 = vmatprep.subr.bf16.mxu0 0
    %1105 = vmatpush1.bf16.msra.mxu0 0
    %1106 = vmatprep.subr.bf16.mxu0 0
    %1107 = vmatpush1.bf16.msra.mxu0 0
    %1108 = vmatprep.mubr.bf16.mxu0 0
    %1109 = vmatmul.mubr.bf16.gmra.mrb[0].mxu0 %v72
    %v1110 = vpop.f32.mrb[0].mxu0
    %v1111 = vadd.f32 %v1062, %v1110
    %v1112 = vpop.f32.mrb[0].mxu0
    %v1113 = vpop.f32.mrb[0].mxu0
    %v1114 = vadd.f32 %v1062, %v1113
    %v1115 = vpop.f32.mrb[0].mxu0
    %1116 = vdwg.mxu0
    %s1117 = scalar_lea.vmem %s2, 160
    %v1118 = vld [vmem:[%s1117] sm:$0xf]
    %v1119 = vld [vmem:[%s1117 + $0x4] sm:$0xf]
    %v1120 = vld [vmem:[%s1117 + $0x8] sm:$0xf]
    %v1121 = vld [vmem:[%s1117 + $0xc] sm:$0xf]
    %s1122 = scalar_lea.vmem %s3, 10
    %v1123 = vld [vmem:[%s1122] sm:$0x1]
    %v1125 = vlaneseq
    %v1126 = vshrl.u32 %v1125, 7
    %v1127 = vsub.s32 0, %v1126
    %v1128 = vrot.slane %v1123, %v1127
    %v1134 = vunpack.c.l.b16 %v1118
    %v1135 = vunpack.c.l.b16 %v1119
    %v1136 = vunpack.c.l.b16 %v1120
    %v1137 = vunpack.c.l.b16 %v1121
    %v1138 = vpack.c.b16 %v1135, %v1134
    %v1139 = vpack.c.b16 %v1137, %v1136
    %1142 = vmatprep.subr.bf16.mxu0 0
    %1143 = vmatpush1.bf16.msra.mxu0 %v1138
    %1144 = vmatprep.subr.bf16.mxu0 0
    %1145 = vmatpush1.bf16.msra.mxu0 %v1139
    %1146 = vmatprep.subr.bf16.mxu0 0
    %1147 = vmatpush1.bf16.msra.mxu0 0
    %1148 = vmatprep.subr.bf16.mxu0 0
    %1149 = vmatpush1.bf16.msra.mxu0 0
    %1150 = vmatprep.subr.bf16.mxu0 0
    %1151 = vmatpush1.bf16.msra.mxu0 0
    %1152 = vmatprep.subr.bf16.mxu0 0
    %1153 = vmatpush1.bf16.msra.mxu0 0
    %1154 = vmatprep.subr.bf16.mxu0 0
    %1155 = vmatpush1.bf16.msra.mxu0 0
    %1156 = vmatprep.subr.bf16.mxu0 0
    %1157 = vmatpush1.bf16.msra.mxu0 0
    %1158 = vmatprep.subr.bf16.mxu0 0
    %1159 = vmatpush1.bf16.msra.mxu0 0
    %1160 = vmatprep.subr.bf16.mxu0 0
    %1161 = vmatpush1.bf16.msra.mxu0 0
    %1162 = vmatprep.subr.bf16.mxu0 0
    %1163 = vmatpush1.bf16.msra.mxu0 0
    %1164 = vmatprep.subr.bf16.mxu0 0
    %1165 = vmatpush1.bf16.msra.mxu0 0
    %1166 = vmatprep.subr.bf16.mxu0 0
    %1167 = vmatpush1.bf16.msra.mxu0 0
    %1168 = vmatprep.subr.bf16.mxu0 0
    %1169 = vmatpush1.bf16.msra.mxu0 0
    %1170 = vmatprep.subr.bf16.mxu0 0
    %1171 = vmatpush1.bf16.msra.mxu0 0
    %1172 = vmatprep.subr.bf16.mxu0 0
    %1173 = vmatpush1.bf16.msra.mxu0 0
    %1174 = vmatprep.mubr.bf16.mxu0 0
    %1175 = vmatmul.mubr.bf16.gmra.mrb[0].mxu0 %v207
    %v1176 = vpop.f32.mrb[0].mxu0
    %v1177 = vadd.f32 %v1128, %v1176
    %v1178 = vpop.f32.mrb[0].mxu0
    %v1179 = vpop.f32.mrb[0].mxu0
    %v1180 = vadd.f32 %v1128, %v1179
    %v1181 = vpop.f32.mrb[0].mxu0
    %1182 = vdwg.mxu0
    %v1183 = vpack.c.bf16 %v1045, %v1045
    %v1184 = vpack.c.bf16 %v1048, %v1048
    %v1185 = vpack.c.bf16 %v1111, %v1111
    %v1186 = vpack.c.bf16 %v1114, %v1114
    %v1187 = vpack.c.bf16 %v1177, %v1177
    %v1188 = vpack.c.bf16 %v1180, %v1180
    %v1190 = vsel %vm256, %v1183, 0
    %v1193 = vsel %vm256, %v1185, 0
    %1195 = vmatprep.subr.bf16.mxu0 0
    %1196 = vmatpush1.bf16.xpose.msra.mxu0 %v1193
    %1197 = vmatprep.subr.bf16.mxu0 0
    %1198 = vmatpush1.bf16.xpose.msra.mxu0 0
    %1199 = vmatprep.subr.bf16.mxu0 0
    %1200 = vmatpush1.bf16.xpose.msra.mxu0 0
    %1201 = vmatprep.subr.bf16.mxu0 0
    %1202 = vmatpush1.bf16.xpose.msra.mxu0 0
    %1203 = vmatprep.subr.bf16.mxu0 0
    %1204 = vmatpush1.bf16.xpose.msra.mxu0 0
    %1205 = vmatprep.subr.bf16.mxu0 0
    %1206 = vmatpush1.bf16.xpose.msra.mxu0 0
    %1207 = vmatprep.subr.bf16.mxu0 0
    %1208 = vmatpush1.bf16.xpose.msra.mxu0 0
    %1209 = vmatprep.subr.bf16.mxu0 0
    %1210 = vmatpush1.bf16.xpose.msra.mxu0 0
    %1211 = vmatprep.subr.bf16.mxu0 0
    %1212 = vmatpush1.bf16.xpose.msra.mxu0 0
    %1213 = vmatprep.subr.bf16.mxu0 0
    %1214 = vmatpush1.bf16.xpose.msra.mxu0 0
    %1215 = vmatprep.subr.bf16.mxu0 0
    %1216 = vmatpush1.bf16.xpose.msra.mxu0 0
    %1217 = vmatprep.subr.bf16.mxu0 0
    %1218 = vmatpush1.bf16.xpose.msra.mxu0 0
    %1219 = vmatprep.subr.bf16.mxu0 0
    %1220 = vmatpush1.bf16.xpose.msra.mxu0 0
    %1221 = vmatprep.subr.bf16.mxu0 0
    %1222 = vmatpush1.bf16.xpose.msra.mxu0 0
    %1223 = vmatprep.subr.bf16.mxu0 0
    %1224 = vmatpush1.bf16.xpose.msra.mxu0 0
    %1225 = vmatprep.subr.bf16.mxu0 0
    %1226 = vmatpush1.bf16.xpose.msra.mxu0 0
    %1227 = vmatprep.mubr.bf16.mxu0 0
    %1228 = vmatmul.mubr.bf16.gmra.mrb[0].mxu0 %v1190
    %v1229 = vpop.f32.mrb[0].mxu0
    %v1230 = vadd.f32 0.0, %v1229
    %v1231 = vpop.f32.mrb[0].mxu0
    %v1232 = vpop.f32.mrb[0].mxu0
    %v1233 = vpop.f32.mrb[0].mxu0
    %1234 = vdwg.mxu0
    %v1236 = vsel %vm256, %v1184, 0
    %v1239 = vsel %vm256, %v1186, 0
    %1241 = vmatprep.subr.bf16.mxu0 0
    %1242 = vmatpush1.bf16.xpose.msra.mxu0 %v1239
    %1243 = vmatprep.subr.bf16.mxu0 0
    %1244 = vmatpush1.bf16.xpose.msra.mxu0 0
    %1245 = vmatprep.subr.bf16.mxu0 0
    %1246 = vmatpush1.bf16.xpose.msra.mxu0 0
    %1247 = vmatprep.subr.bf16.mxu0 0
    %1248 = vmatpush1.bf16.xpose.msra.mxu0 0
    %1249 = vmatprep.subr.bf16.mxu0 0
    %1250 = vmatpush1.bf16.xpose.msra.mxu0 0
    %1251 = vmatprep.subr.bf16.mxu0 0
    %1252 = vmatpush1.bf16.xpose.msra.mxu0 0
    %1253 = vmatprep.subr.bf16.mxu0 0
    %1254 = vmatpush1.bf16.xpose.msra.mxu0 0
    %1255 = vmatprep.subr.bf16.mxu0 0
    %1256 = vmatpush1.bf16.xpose.msra.mxu0 0
    %1257 = vmatprep.subr.bf16.mxu0 0
    %1258 = vmatpush1.bf16.xpose.msra.mxu0 0
    %1259 = vmatprep.subr.bf16.mxu0 0
    %1260 = vmatpush1.bf16.xpose.msra.mxu0 0
    %1261 = vmatprep.subr.bf16.mxu0 0
    %1262 = vmatpush1.bf16.xpose.msra.mxu0 0
    %1263 = vmatprep.subr.bf16.mxu0 0
    %1264 = vmatpush1.bf16.xpose.msra.mxu0 0
    %1265 = vmatprep.subr.bf16.mxu0 0
    %1266 = vmatpush1.bf16.xpose.msra.mxu0 0
    %1267 = vmatprep.subr.bf16.mxu0 0
    %1268 = vmatpush1.bf16.xpose.msra.mxu0 0
    %1269 = vmatprep.subr.bf16.mxu0 0
    %1270 = vmatpush1.bf16.xpose.msra.mxu0 0
    %1271 = vmatprep.subr.bf16.mxu0 0
    %1272 = vmatpush1.bf16.xpose.msra.mxu0 0
    %1273 = vmatprep.mubr.bf16.mxu0 0
    %1274 = vmatmul.mubr.bf16.gmra.mrb[0].mxu0 %v1236
    %v1275 = vpop.f32.mrb[0].mxu0
    %v1276 = vadd.f32 0.0, %v1275
    %v1277 = vpop.f32.mrb[0].mxu0
    %v1278 = vpop.f32.mrb[0].mxu0
    %v1279 = vpop.f32.mrb[0].mxu0
    %1280 = vdwg.mxu0
    %v1281 = vmul.f32 %v1230, 0.35355338
    %v1282 = vmul.f32 %v1276, 0.35355338
    %v1283 = vsel %vm256, %v1281, -inf
    %1284 = vmax.xlane.f32.xlu0 %v1283
    %v1285 = vpop.xlane.xlu0 %1284
    %v1286 = vsel %vm256, %v1282, -inf
    %1287 = vmax.xlane.f32.xlu0 %v1286
    %v1288 = vpop.xlane.xlu0 %1287
    %v1289 = vsub.f32 %v1281, %v1285
    %v1290 = vsub.f32 %v1282, %v1288
    %v1291 = vmul.f32 %v1289, 1.442695
    %v1292 = vpow.pop %v1291
    %v1293 = vmul.f32 %v1290, 1.442695
    %v1294 = vpow.pop %v1293
    %v1295 = vsel %vm256, %v1292, 0.0
    %1296 = vadd.xlane.f32.xlu0 %v1295
    %v1297 = vpop.xlane.xlu0 %1296
    %v1298 = vsel %vm256, %v1294, 0.0
    %1299 = vadd.xlane.f32.xlu0 %v1298
    %v1300 = vpop.xlane.xlu0 %1299
    %v1301 = vrcp.pop %v1297
    %v1302 = vrcp.pop %v1300
    %v1303 = vmul.f32 %v1292, %v1301
    %v1304 = vmul.f32 %v1294, %v1302
    %v1305 = vpack.c.bf16 %v1303, %v1303
    %v1306 = vpack.c.bf16 %v1304, %v1304
    %v1308 = vsel %vm256, %v1305, 0
    %v1311 = vsel %vm378, %v1187, 0
    %1313 = vmatprep.subr.bf16.mxu0 0
    %1314 = vmatpush1.bf16.msra.mxu0 %v1311
    %1315 = vmatprep.subr.bf16.mxu0 0
    %1316 = vmatpush1.bf16.msra.mxu0 0
    %1317 = vmatprep.subr.bf16.mxu0 0
    %1318 = vmatpush1.bf16.msra.mxu0 0
    %1319 = vmatprep.subr.bf16.mxu0 0
    %1320 = vmatpush1.bf16.msra.mxu0 0
    %1321 = vmatprep.subr.bf16.mxu0 0
    %1322 = vmatpush1.bf16.msra.mxu0 0
    %1323 = vmatprep.subr.bf16.mxu0 0
    %1324 = vmatpush1.bf16.msra.mxu0 0
    %1325 = vmatprep.subr.bf16.mxu0 0
    %1326 = vmatpush1.bf16.msra.mxu0 0
    %1327 = vmatprep.subr.bf16.mxu0 0
    %1328 = vmatpush1.bf16.msra.mxu0 0
    %1329 = vmatprep.subr.bf16.mxu0 0
    %1330 = vmatpush1.bf16.msra.mxu0 0
    %1331 = vmatprep.subr.bf16.mxu0 0
    %1332 = vmatpush1.bf16.msra.mxu0 0
    %1333 = vmatprep.subr.bf16.mxu0 0
    %1334 = vmatpush1.bf16.msra.mxu0 0
    %1335 = vmatprep.subr.bf16.mxu0 0
    %1336 = vmatpush1.bf16.msra.mxu0 0
    %1337 = vmatprep.subr.bf16.mxu0 0
    %1338 = vmatpush1.bf16.msra.mxu0 0
    %1339 = vmatprep.subr.bf16.mxu0 0
    %1340 = vmatpush1.bf16.msra.mxu0 0
    %1341 = vmatprep.subr.bf16.mxu0 0
    %1342 = vmatpush1.bf16.msra.mxu0 0
    %1343 = vmatprep.subr.bf16.mxu0 0
    %1344 = vmatpush1.bf16.msra.mxu0 0
    %1345 = vmatprep.mubr.bf16.mxu0 0
    %1346 = vmatmul.mubr.bf16.gmra.mrb[0].mxu0 %v1308
    %v1347 = vpop.f32.mrb[0].mxu0
    %v1348 = vadd.f32 0.0, %v1347
    %v1349 = vpop.f32.mrb[0].mxu0
    %v1350 = vpop.f32.mrb[0].mxu0
    %v1351 = vpop.f32.mrb[0].mxu0
    %1352 = vdwg.mxu0
    %v1354 = vsel %vm256, %v1306, 0
    %v1357 = vsel %vm378, %v1188, 0
    %1359 = vmatprep.subr.bf16.mxu0 0
    %1360 = vmatpush1.bf16.msra.mxu0 %v1357
    %1361 = vmatprep.subr.bf16.mxu0 0
    %1362 = vmatpush1.bf16.msra.mxu0 0
    %1363 = vmatprep.subr.bf16.mxu0 0
    %1364 = vmatpush1.bf16.msra.mxu0 0
    %1365 = vmatprep.subr.bf16.mxu0 0
    %1366 = vmatpush1.bf16.msra.mxu0 0
    %1367 = vmatprep.subr.bf16.mxu0 0
    %1368 = vmatpush1.bf16.msra.mxu0 0
    %1369 = vmatprep.subr.bf16.mxu0 0
    %1370 = vmatpush1.bf16.msra.mxu0 0
    %1371 = vmatprep.subr.bf16.mxu0 0
    %1372 = vmatpush1.bf16.msra.mxu0 0
    %1373 = vmatprep.subr.bf16.mxu0 0
    %1374 = vmatpush1.bf16.msra.mxu0 0
    %1375 = vmatprep.subr.bf16.mxu0 0
    %1376 = vmatpush1.bf16.msra.mxu0 0
    %1377 = vmatprep.subr.bf16.mxu0 0
    %1378 = vmatpush1.bf16.msra.mxu0 0
    %1379 = vmatprep.subr.bf16.mxu0 0
    %1380 = vmatpush1.bf16.msra.mxu0 0
    %1381 = vmatprep.subr.bf16.mxu0 0
    %1382 = vmatpush1.bf16.msra.mxu0 0
    %1383 = vmatprep.subr.bf16.mxu0 0
    %1384 = vmatpush1.bf16.msra.mxu0 0
    %1385 = vmatprep.subr.bf16.mxu0 0
    %1386 = vmatpush1.bf16.msra.mxu0 0
    %1387 = vmatprep.subr.bf16.mxu0 0
    %1388 = vmatpush1.bf16.msra.mxu0 0
    %1389 = vmatprep.subr.bf16.mxu0 0
    %1390 = vmatpush1.bf16.msra.mxu0 0
    %1391 = vmatprep.mubr.bf16.mxu0 0
    %1392 = vmatmul.mubr.bf16.gmra.mrb[0].mxu0 %v1354
    %v1393 = vpop.f32.mrb[0].mxu0
    %v1394 = vadd.f32 0.0, %v1393
    %v1395 = vpop.f32.mrb[0].mxu0
    %v1396 = vpop.f32.mrb[0].mxu0
    %v1397 = vpop.f32.mrb[0].mxu0
    %1398 = vdwg.mxu0
    %v1399 = vpack.c.bf16 %v1394, %v1348
    %s1400 = scalar_lea.vmem %s4, 8
    %v1401 = vld [vmem:[%s1400] sm:$0xf]
    %v1403 = vsel %vm256, %v1399, 0
    %v1406 = vsel %vm378, %v1401, 0
    %1408 = vmatprep.subr.bf16.mxu0 0
    %1409 = vmatpush1.bf16.msra.mxu0 %v1406
    %1410 = vmatprep.subr.bf16.mxu0 0
    %1411 = vmatpush1.bf16.msra.mxu0 0
    %1412 = vmatprep.subr.bf16.mxu0 0
    %1413 = vmatpush1.bf16.msra.mxu0 0
    %1414 = vmatprep.subr.bf16.mxu0 0
    %1415 = vmatpush1.bf16.msra.mxu0 0
    %1416 = vmatprep.subr.bf16.mxu0 0
    %1417 = vmatpush1.bf16.msra.mxu0 0
    %1418 = vmatprep.subr.bf16.mxu0 0
    %1419 = vmatpush1.bf16.msra.mxu0 0
    %1420 = vmatprep.subr.bf16.mxu0 0
    %1421 = vmatpush1.bf16.msra.mxu0 0
    %1422 = vmatprep.subr.bf16.mxu0 0
    %1423 = vmatpush1.bf16.msra.mxu0 0
    %1424 = vmatprep.subr.bf16.mxu0 0
    %1425 = vmatpush1.bf16.msra.mxu0 0
    %1426 = vmatprep.subr.bf16.mxu0 0
    %1427 = vmatpush1.bf16.msra.mxu0 0
    %1428 = vmatprep.subr.bf16.mxu0 0
    %1429 = vmatpush1.bf16.msra.mxu0 0
    %1430 = vmatprep.subr.bf16.mxu0 0
    %1431 = vmatpush1.bf16.msra.mxu0 0
    %1432 = vmatprep.subr.bf16.mxu0 0
    %1433 = vmatpush1.bf16.msra.mxu0 0
    %1434 = vmatprep.subr.bf16.mxu0 0
    %1435 = vmatpush1.bf16.msra.mxu0 0
    %1436 = vmatprep.subr.bf16.mxu0 0
    %1437 = vmatpush1.bf16.msra.mxu0 0
    %1438 = vmatprep.subr.bf16.mxu0 0
    %1439 = vmatpush1.bf16.msra.mxu0 0
    %1440 = vmatprep.mubr.bf16.mxu0 0
    %1441 = vmatmul.mubr.bf16.gmra.mrb[0].mxu0 %v1403
    %v1442 = vpop.f32.mrb[0].mxu0
    %v1443 = vadd.f32 0.0, %v1442
    %v1444 = vpop.f32.mrb[0].mxu0
    %v1445 = vpop.f32.mrb[0].mxu0
    %v1446 = vadd.f32 0.0, %v1445
    %v1447 = vpop.f32.mrb[0].mxu0
    %1448 = vdwg.mxu0
    %v1449 = vadd.f32 %v983, %v1443
    %v1450 = vadd.f32 %v984, %v1446
    %s1451 = scalar_lea.vmem %s2, 48
    %v1452 = vld [vmem:[%s1451] sm:$0xf]
    %v1453 = vld [vmem:[%s1451 + $0x4] sm:$0xf]
    %v1454 = vld [vmem:[%s1451 + $0x8] sm:$0xf]
    %v1455 = vld [vmem:[%s1451 + $0xc] sm:$0xf]
    %s1456 = scalar_lea.vmem %s3, 3
    %v1457 = vld [vmem:[%s1456] sm:$0x1]
    %v1459 = vlaneseq
    %v1460 = vshrl.u32 %v1459, 7
    %v1461 = vsub.s32 0, %v1460
    %v1462 = vrot.slane %v1457, %v1461
    %v1468 = vunpack.c.l.b16 %v1452
    %v1469 = vunpack.c.l.b16 %v1453
    %v1470 = vunpack.c.l.b16 %v1454
    %v1471 = vunpack.c.l.b16 %v1455
    %v1472 = vpack.c.b16 %v1469, %v1468
    %v1473 = vpack.c.b16 %v1471, %v1470
    %1476 = vmatprep.subr.bf16.mxu0 0
    %1477 = vmatpush1.bf16.msra.mxu0 %v1472
    %1478 = vmatprep.subr.bf16.mxu0 0
    %1479 = vmatpush1.bf16.msra.mxu0 %v1473
    %1480 = vmatprep.subr.bf16.mxu0 0
    %1481 = vmatpush1.bf16.msra.mxu0 0
    %1482 = vmatprep.subr.bf16.mxu0 0
    %1483 = vmatpush1.bf16.msra.mxu0 0
    %1484 = vmatprep.subr.bf16.mxu0 0
    %1485 = vmatpush1.bf16.msra.mxu0 0
    %1486 = vmatprep.subr.bf16.mxu0 0
    %1487 = vmatpush1.bf16.msra.mxu0 0
    %1488 = vmatprep.subr.bf16.mxu0 0
    %1489 = vmatpush1.bf16.msra.mxu0 0
    %1490 = vmatprep.subr.bf16.mxu0 0
    %1491 = vmatpush1.bf16.msra.mxu0 0
    %1492 = vmatprep.subr.bf16.mxu0 0
    %1493 = vmatpush1.bf16.msra.mxu0 0
    %1494 = vmatprep.subr.bf16.mxu0 0
    %1495 = vmatpush1.bf16.msra.mxu0 0
    %1496 = vmatprep.subr.bf16.mxu0 0
    %1497 = vmatpush1.bf16.msra.mxu0 0
    %1498 = vmatprep.subr.bf16.mxu0 0
    %1499 = vmatpush1.bf16.msra.mxu0 0
    %1500 = vmatprep.subr.bf16.mxu0 0
    %1501 = vmatpush1.bf16.msra.mxu0 0
    %1502 = vmatprep.subr.bf16.mxu0 0
    %1503 = vmatpush1.bf16.msra.mxu0 0
    %1504 = vmatprep.subr.bf16.mxu0 0
    %1505 = vmatpush1.bf16.msra.mxu0 0
    %1506 = vmatprep.subr.bf16.mxu0 0
    %1507 = vmatpush1.bf16.msra.mxu0 0
    %1508 = vmatprep.mubr.bf16.mxu0 0
    %1509 = vmatmul.mubr.bf16.gmra.mrb[0].mxu0 %v72
    %v1510 = vpop.f32.mrb[0].mxu0
    %v1511 = vadd.f32 %v1462, %v1510
    %v1512 = vpop.f32.mrb[0].mxu0
    %v1513 = vpop.f32.mrb[0].mxu0
    %v1514 = vadd.f32 %v1462, %v1513
    %v1515 = vpop.f32.mrb[0].mxu0
    %1516 = vdwg.mxu0
    %s1517 = scalar_lea.vmem %s2, 112
    %v1518 = vld [vmem:[%s1517] sm:$0xf]
    %v1519 = vld [vmem:[%s1517 + $0x4] sm:$0xf]
    %v1520 = vld [vmem:[%s1517 + $0x8] sm:$0xf]
    %v1521 = vld [vmem:[%s1517 + $0xc] sm:$0xf]
    %s1522 = scalar_lea.vmem %s3, 7
    %v1523 = vld [vmem:[%s1522] sm:$0x1]
    %v1525 = vlaneseq
    %v1526 = vshrl.u32 %v1525, 7
    %v1527 = vsub.s32 0, %v1526
    %v1528 = vrot.slane %v1523, %v1527
    %v1534 = vunpack.c.l.b16 %v1518
    %v1535 = vunpack.c.l.b16 %v1519
    %v1536 = vunpack.c.l.b16 %v1520
    %v1537 = vunpack.c.l.b16 %v1521
    %v1538 = vpack.c.b16 %v1535, %v1534
    %v1539 = vpack.c.b16 %v1537, %v1536
    %1542 = vmatprep.subr.bf16.mxu0 0
    %1543 = vmatpush1.bf16.msra.mxu0 %v1538
    %1544 = vmatprep.subr.bf16.mxu0 0
    %1545 = vmatpush1.bf16.msra.mxu0 %v1539
    %1546 = vmatprep.subr.bf16.mxu0 0
    %1547 = vmatpush1.bf16.msra.mxu0 0
    %1548 = vmatprep.subr.bf16.mxu0 0
    %1549 = vmatpush1.bf16.msra.mxu0 0
    %1550 = vmatprep.subr.bf16.mxu0 0
    %1551 = vmatpush1.bf16.msra.mxu0 0
    %1552 = vmatprep.subr.bf16.mxu0 0
    %1553 = vmatpush1.bf16.msra.mxu0 0
    %1554 = vmatprep.subr.bf16.mxu0 0
    %1555 = vmatpush1.bf16.msra.mxu0 0
    %1556 = vmatprep.subr.bf16.mxu0 0
    %1557 = vmatpush1.bf16.msra.mxu0 0
    %1558 = vmatprep.subr.bf16.mxu0 0
    %1559 = vmatpush1.bf16.msra.mxu0 0
    %1560 = vmatprep.subr.bf16.mxu0 0
    %1561 = vmatpush1.bf16.msra.mxu0 0
    %1562 = vmatprep.subr.bf16.mxu0 0
    %1563 = vmatpush1.bf16.msra.mxu0 0
    %1564 = vmatprep.subr.bf16.mxu0 0
    %1565 = vmatpush1.bf16.msra.mxu0 0
    %1566 = vmatprep.subr.bf16.mxu0 0
    %1567 = vmatpush1.bf16.msra.mxu0 0
    %1568 = vmatprep.subr.bf16.mxu0 0
    %1569 = vmatpush1.bf16.msra.mxu0 0
    %1570 = vmatprep.subr.bf16.mxu0 0
    %1571 = vmatpush1.bf16.msra.mxu0 0
    %1572 = vmatprep.subr.bf16.mxu0 0
    %1573 = vmatpush1.bf16.msra.mxu0 0
    %1574 = vmatprep.mubr.bf16.mxu0 0
    %1575 = vmatmul.mubr.bf16.gmra.mrb[0].mxu0 %v72
    %v1576 = vpop.f32.mrb[0].mxu0
    %v1577 = vadd.f32 %v1528, %v1576
    %v1578 = vpop.f32.mrb[0].mxu0
    %v1579 = vpop.f32.mrb[0].mxu0
    %v1580 = vadd.f32 %v1528, %v1579
    %v1581 = vpop.f32.mrb[0].mxu0
    %1582 = vdwg.mxu0
    %s1583 = scalar_lea.vmem %s2, 176
    %v1584 = vld [vmem:[%s1583] sm:$0xf]
    %v1585 = vld [vmem:[%s1583 + $0x4] sm:$0xf]
    %v1586 = vld [vmem:[%s1583 + $0x8] sm:$0xf]
    %v1587 = vld [vmem:[%s1583 + $0xc] sm:$0xf]
    %s1588 = scalar_lea.vmem %s3, 11
    %v1589 = vld [vmem:[%s1588] sm:$0x1]
    %v1591 = vlaneseq
    %v1592 = vshrl.u32 %v1591, 7
    %v1593 = vsub.s32 0, %v1592
    %v1594 = vrot.slane %v1589, %v1593
    %v1600 = vunpack.c.l.b16 %v1584
    %v1601 = vunpack.c.l.b16 %v1585
    %v1602 = vunpack.c.l.b16 %v1586
    %v1603 = vunpack.c.l.b16 %v1587
    %v1604 = vpack.c.b16 %v1601, %v1600
    %v1605 = vpack.c.b16 %v1603, %v1602
    %1608 = vmatprep.subr.bf16.mxu0 0
    %1609 = vmatpush1.bf16.msra.mxu0 %v1604
    %1610 = vmatprep.subr.bf16.mxu0 0
    %1611 = vmatpush1.bf16.msra.mxu0 %v1605
    %1612 = vmatprep.subr.bf16.mxu0 0
    %1613 = vmatpush1.bf16.msra.mxu0 0
    %1614 = vmatprep.subr.bf16.mxu0 0
    %1615 = vmatpush1.bf16.msra.mxu0 0
    %1616 = vmatprep.subr.bf16.mxu0 0
    %1617 = vmatpush1.bf16.msra.mxu0 0
    %1618 = vmatprep.subr.bf16.mxu0 0
    %1619 = vmatpush1.bf16.msra.mxu0 0
    %1620 = vmatprep.subr.bf16.mxu0 0
    %1621 = vmatpush1.bf16.msra.mxu0 0
    %1622 = vmatprep.subr.bf16.mxu0 0
    %1623 = vmatpush1.bf16.msra.mxu0 0
    %1624 = vmatprep.subr.bf16.mxu0 0
    %1625 = vmatpush1.bf16.msra.mxu0 0
    %1626 = vmatprep.subr.bf16.mxu0 0
    %1627 = vmatpush1.bf16.msra.mxu0 0
    %1628 = vmatprep.subr.bf16.mxu0 0
    %1629 = vmatpush1.bf16.msra.mxu0 0
    %1630 = vmatprep.subr.bf16.mxu0 0
    %1631 = vmatpush1.bf16.msra.mxu0 0
    %1632 = vmatprep.subr.bf16.mxu0 0
    %1633 = vmatpush1.bf16.msra.mxu0 0
    %1634 = vmatprep.subr.bf16.mxu0 0
    %1635 = vmatpush1.bf16.msra.mxu0 0
    %1636 = vmatprep.subr.bf16.mxu0 0
    %1637 = vmatpush1.bf16.msra.mxu0 0
    %1638 = vmatprep.subr.bf16.mxu0 0
    %1639 = vmatpush1.bf16.msra.mxu0 0
    %1640 = vmatprep.mubr.bf16.mxu0 0
    %1641 = vmatmul.mubr.bf16.gmra.mrb[0].mxu0 %v207
    %v1642 = vpop.f32.mrb[0].mxu0
    %v1643 = vadd.f32 %v1594, %v1642
    %v1644 = vpop.f32.mrb[0].mxu0
    %v1645 = vpop.f32.mrb[0].mxu0
    %v1646 = vadd.f32 %v1594, %v1645
    %v1647 = vpop.f32.mrb[0].mxu0
    %1648 = vdwg.mxu0
    %v1649 = vpack.c.bf16 %v1511, %v1511
    %v1650 = vpack.c.bf16 %v1514, %v1514
    %v1651 = vpack.c.bf16 %v1577, %v1577
    %v1652 = vpack.c.bf16 %v1580, %v1580
    %v1653 = vpack.c.bf16 %v1643, %v1643
    %v1654 = vpack.c.bf16 %v1646, %v1646
    %v1656 = vsel %vm256, %v1649, 0
    %v1659 = vsel %vm256, %v1651, 0
    %1661 = vmatprep.subr.bf16.mxu0 0
    %1662 = vmatpush1.bf16.xpose.msra.mxu0 %v1659
    %1663 = vmatprep.subr.bf16.mxu0 0
    %1664 = vmatpush1.bf16.xpose.msra.mxu0 0
    %1665 = vmatprep.subr.bf16.mxu0 0
    %1666 = vmatpush1.bf16.xpose.msra.mxu0 0
    %1667 = vmatprep.subr.bf16.mxu0 0
    %1668 = vmatpush1.bf16.xpose.msra.mxu0 0
    %1669 = vmatprep.subr.bf16.mxu0 0
    %1670 = vmatpush1.bf16.xpose.msra.mxu0 0
    %1671 = vmatprep.subr.bf16.mxu0 0
    %1672 = vmatpush1.bf16.xpose.msra.mxu0 0
    %1673 = vmatprep.subr.bf16.mxu0 0
    %1674 = vmatpush1.bf16.xpose.msra.mxu0 0
    %1675 = vmatprep.subr.bf16.mxu0 0
    %1676 = vmatpush1.bf16.xpose.msra.mxu0 0
    %1677 = vmatprep.subr.bf16.mxu0 0
    %1678 = vmatpush1.bf16.xpose.msra.mxu0 0
    %1679 = vmatprep.subr.bf16.mxu0 0
    %1680 = vmatpush1.bf16.xpose.msra.mxu0 0
    %1681 = vmatprep.subr.bf16.mxu0 0
    %1682 = vmatpush1.bf16.xpose.msra.mxu0 0
    %1683 = vmatprep.subr.bf16.mxu0 0
    %1684 = vmatpush1.bf16.xpose.msra.mxu0 0
    %1685 = vmatprep.subr.bf16.mxu0 0
    %1686 = vmatpush1.bf16.xpose.msra.mxu0 0
    %1687 = vmatprep.subr.bf16.mxu0 0
    %1688 = vmatpush1.bf16.xpose.msra.mxu0 0
    %1689 = vmatprep.subr.bf16.mxu0 0
    %1690 = vmatpush1.bf16.xpose.msra.mxu0 0
    %1691 = vmatprep.subr.bf16.mxu0 0
    %1692 = vmatpush1.bf16.xpose.msra.mxu0 0
    %1693 = vmatprep.mubr.bf16.mxu0 0
    %1694 = vmatmul.mubr.bf16.gmra.mrb[0].mxu0 %v1656
    %v1695 = vpop.f32.mrb[0].mxu0
    %v1696 = vadd.f32 0.0, %v1695
    %v1697 = vpop.f32.mrb[0].mxu0
    %v1698 = vpop.f32.mrb[0].mxu0
    %v1699 = vpop.f32.mrb[0].mxu0
    %1700 = vdwg.mxu0
    %v1702 = vsel %vm256, %v1650, 0
    %v1705 = vsel %vm256, %v1652, 0
    %1707 = vmatprep.subr.bf16.mxu0 0
    %1708 = vmatpush1.bf16.xpose.msra.mxu0 %v1705
    %1709 = vmatprep.subr.bf16.mxu0 0
    %1710 = vmatpush1.bf16.xpose.msra.mxu0 0
    %1711 = vmatprep.subr.bf16.mxu0 0
    %1712 = vmatpush1.bf16.xpose.msra.mxu0 0
    %1713 = vmatprep.subr.bf16.mxu0 0
    %1714 = vmatpush1.bf16.xpose.msra.mxu0 0
    %1715 = vmatprep.subr.bf16.mxu0 0
    %1716 = vmatpush1.bf16.xpose.msra.mxu0 0
    %1717 = vmatprep.subr.bf16.mxu0 0
    %1718 = vmatpush1.bf16.xpose.msra.mxu0 0
    %1719 = vmatprep.subr.bf16.mxu0 0
    %1720 = vmatpush1.bf16.xpose.msra.mxu0 0
    %1721 = vmatprep.subr.bf16.mxu0 0
    %1722 = vmatpush1.bf16.xpose.msra.mxu0 0
    %1723 = vmatprep.subr.bf16.mxu0 0
    %1724 = vmatpush1.bf16.xpose.msra.mxu0 0
    %1725 = vmatprep.subr.bf16.mxu0 0
    %1726 = vmatpush1.bf16.xpose.msra.mxu0 0
    %1727 = vmatprep.subr.bf16.mxu0 0
    %1728 = vmatpush1.bf16.xpose.msra.mxu0 0
    %1729 = vmatprep.subr.bf16.mxu0 0
    %1730 = vmatpush1.bf16.xpose.msra.mxu0 0
    %1731 = vmatprep.subr.bf16.mxu0 0
    %1732 = vmatpush1.bf16.xpose.msra.mxu0 0
    %1733 = vmatprep.subr.bf16.mxu0 0
    %1734 = vmatpush1.bf16.xpose.msra.mxu0 0
    %1735 = vmatprep.subr.bf16.mxu0 0
    %1736 = vmatpush1.bf16.xpose.msra.mxu0 0
    %1737 = vmatprep.subr.bf16.mxu0 0
    %1738 = vmatpush1.bf16.xpose.msra.mxu0 0
    %1739 = vmatprep.mubr.bf16.mxu0 0
    %1740 = vmatmul.mubr.bf16.gmra.mrb[0].mxu0 %v1702
    %v1741 = vpop.f32.mrb[0].mxu0
    %v1742 = vadd.f32 0.0, %v1741
    %v1743 = vpop.f32.mrb[0].mxu0
    %v1744 = vpop.f32.mrb[0].mxu0
    %v1745 = vpop.f32.mrb[0].mxu0
    %1746 = vdwg.mxu0
    %v1747 = vmul.f32 %v1696, 0.35355338
    %v1748 = vmul.f32 %v1742, 0.35355338
    %v1749 = vsel %vm256, %v1747, -inf
    %1750 = vmax.xlane.f32.xlu0 %v1749
    %v1751 = vpop.xlane.xlu0 %1750
    %v1752 = vsel %vm256, %v1748, -inf
    %1753 = vmax.xlane.f32.xlu0 %v1752
    %v1754 = vpop.xlane.xlu0 %1753
    %v1755 = vsub.f32 %v1747, %v1751
    %v1756 = vsub.f32 %v1748, %v1754
    %v1757 = vmul.f32 %v1755, 1.442695
    %v1758 = vpow.pop %v1757
    %v1759 = vmul.f32 %v1756, 1.442695
    %v1760 = vpow.pop %v1759
    %v1761 = vsel %vm256, %v1758, 0.0
    %1762 = vadd.xlane.f32.xlu0 %v1761
    %v1763 = vpop.xlane.xlu0 %1762
    %v1764 = vsel %vm256, %v1760, 0.0
    %1765 = vadd.xlane.f32.xlu0 %v1764
    %v1766 = vpop.xlane.xlu0 %1765
    %v1767 = vrcp.pop %v1763
    %v1768 = vrcp.pop %v1766
    %v1769 = vmul.f32 %v1758, %v1767
    %v1770 = vmul.f32 %v1760, %v1768
    %v1771 = vpack.c.bf16 %v1769, %v1769
    %v1772 = vpack.c.bf16 %v1770, %v1770
    %v1774 = vsel %vm256, %v1771, 0
    %v1777 = vsel %vm378, %v1653, 0
    %1779 = vmatprep.subr.bf16.mxu0 0
    %1780 = vmatpush1.bf16.msra.mxu0 %v1777
    %1781 = vmatprep.subr.bf16.mxu0 0
    %1782 = vmatpush1.bf16.msra.mxu0 0
    %1783 = vmatprep.subr.bf16.mxu0 0
    %1784 = vmatpush1.bf16.msra.mxu0 0
    %1785 = vmatprep.subr.bf16.mxu0 0
    %1786 = vmatpush1.bf16.msra.mxu0 0
    %1787 = vmatprep.subr.bf16.mxu0 0
    %1788 = vmatpush1.bf16.msra.mxu0 0
    %1789 = vmatprep.subr.bf16.mxu0 0
    %1790 = vmatpush1.bf16.msra.mxu0 0
    %1791 = vmatprep.subr.bf16.mxu0 0
    %1792 = vmatpush1.bf16.msra.mxu0 0
    %1793 = vmatprep.subr.bf16.mxu0 0
    %1794 = vmatpush1.bf16.msra.mxu0 0
    %1795 = vmatprep.subr.bf16.mxu0 0
    %1796 = vmatpush1.bf16.msra.mxu0 0
    %1797 = vmatprep.subr.bf16.mxu0 0
    %1798 = vmatpush1.bf16.msra.mxu0 0
    %1799 = vmatprep.subr.bf16.mxu0 0
    %1800 = vmatpush1.bf16.msra.mxu0 0
    %1801 = vmatprep.subr.bf16.mxu0 0
    %1802 = vmatpush1.bf16.msra.mxu0 0
    %1803 = vmatprep.subr.bf16.mxu0 0
    %1804 = vmatpush1.bf16.msra.mxu0 0
    %1805 = vmatprep.subr.bf16.mxu0 0
    %1806 = vmatpush1.bf16.msra.mxu0 0
    %1807 = vmatprep.subr.bf16.mxu0 0
    %1808 = vmatpush1.bf16.msra.mxu0 0
    %1809 = vmatprep.subr.bf16.mxu0 0
    %1810 = vmatpush1.bf16.msra.mxu0 0
    %1811 = vmatprep.mubr.bf16.mxu0 0
    %1812 = vmatmul.mubr.bf16.gmra.mrb[0].mxu0 %v1774
    %v1813 = vpop.f32.mrb[0].mxu0
    %v1814 = vadd.f32 0.0, %v1813
    %v1815 = vpop.f32.mrb[0].mxu0
    %v1816 = vpop.f32.mrb[0].mxu0
    %v1817 = vpop.f32.mrb[0].mxu0
    %1818 = vdwg.mxu0
    %v1820 = vsel %vm256, %v1772, 0
    %v1823 = vsel %vm378, %v1654, 0
    %1825 = vmatprep.subr.bf16.mxu0 0
    %1826 = vmatpush1.bf16.msra.mxu0 %v1823
    %1827 = vmatprep.subr.bf16.mxu0 0
    %1828 = vmatpush1.bf16.msra.mxu0 0
    %1829 = vmatprep.subr.bf16.mxu0 0
    %1830 = vmatpush1.bf16.msra.mxu0 0
    %1831 = vmatprep.subr.bf16.mxu0 0
    %1832 = vmatpush1.bf16.msra.mxu0 0
    %1833 = vmatprep.subr.bf16.mxu0 0
    %1834 = vmatpush1.bf16.msra.mxu0 0
    %1835 = vmatprep.subr.bf16.mxu0 0
    %1836 = vmatpush1.bf16.msra.mxu0 0
    %1837 = vmatprep.subr.bf16.mxu0 0
    %1838 = vmatpush1.bf16.msra.mxu0 0
    %1839 = vmatprep.subr.bf16.mxu0 0
    %1840 = vmatpush1.bf16.msra.mxu0 0
    %1841 = vmatprep.subr.bf16.mxu0 0
    %1842 = vmatpush1.bf16.msra.mxu0 0
    %1843 = vmatprep.subr.bf16.mxu0 0
    %1844 = vmatpush1.bf16.msra.mxu0 0
    %1845 = vmatprep.subr.bf16.mxu0 0
    %1846 = vmatpush1.bf16.msra.mxu0 0
    %1847 = vmatprep.subr.bf16.mxu0 0
    %1848 = vmatpush1.bf16.msra.mxu0 0
    %1849 = vmatprep.subr.bf16.mxu0 0
    %1850 = vmatpush1.bf16.msra.mxu0 0
    %1851 = vmatprep.subr.bf16.mxu0 0
    %1852 = vmatpush1.bf16.msra.mxu0 0
    %1853 = vmatprep.subr.bf16.mxu0 0
    %1854 = vmatpush1.bf16.msra.mxu0 0
    %1855 = vmatprep.subr.bf16.mxu0 0
    %1856 = vmatpush1.bf16.msra.mxu0 0
    %1857 = vmatprep.mubr.bf16.mxu0 0
    %1858 = vmatmul.mubr.bf16.gmra.mrb[0].mxu0 %v1820
    %v1859 = vpop.f32.mrb[0].mxu0
    %v1860 = vadd.f32 0.0, %v1859
    %v1861 = vpop.f32.mrb[0].mxu0
    %v1862 = vpop.f32.mrb[0].mxu0
    %v1863 = vpop.f32.mrb[0].mxu0
    %1864 = vdwg.mxu0
    %v1865 = vpack.c.bf16 %v1860, %v1814
    %s1866 = scalar_lea.vmem %s4, 12
    %v1867 = vld [vmem:[%s1866] sm:$0xf]
    %v1869 = vsel %vm256, %v1865, 0
    %v1872 = vsel %vm378, %v1867, 0
    %1874 = vmatprep.subr.bf16.mxu0 0
    %1875 = vmatpush1.bf16.msra.mxu0 %v1872
    %1876 = vmatprep.subr.bf16.mxu0 0
    %1877 = vmatpush1.bf16.msra.mxu0 0
    %1878 = vmatprep.subr.bf16.mxu0 0
    %1879 = vmatpush1.bf16.msra.mxu0 0
    %1880 = vmatprep.subr.bf16.mxu0 0
    %1881 = vmatpush1.bf16.msra.mxu0 0
    %1882 = vmatprep.subr.bf16.mxu0 0
    %1883 = vmatpush1.bf16.msra.mxu0 0
    %1884 = vmatprep.subr.bf16.mxu0 0
    %1885 = vmatpush1.bf16.msra.mxu0 0
    %1886 = vmatprep.subr.bf16.mxu0 0
    %1887 = vmatpush1.bf16.msra.mxu0 0
    %1888 = vmatprep.subr.bf16.mxu0 0
    %1889 = vmatpush1.bf16.msra.mxu0 0
    %1890 = vmatprep.subr.bf16.mxu0 0
    %1891 = vmatpush1.bf16.msra.mxu0 0
    %1892 = vmatprep.subr.bf16.mxu0 0
    %1893 = vmatpush1.bf16.msra.mxu0 0
    %1894 = vmatprep.subr.bf16.mxu0 0
    %1895 = vmatpush1.bf16.msra.mxu0 0
    %1896 = vmatprep.subr.bf16.mxu0 0
    %1897 = vmatpush1.bf16.msra.mxu0 0
    %1898 = vmatprep.subr.bf16.mxu0 0
    %1899 = vmatpush1.bf16.msra.mxu0 0
    %1900 = vmatprep.subr.bf16.mxu0 0
    %1901 = vmatpush1.bf16.msra.mxu0 0
    %1902 = vmatprep.subr.bf16.mxu0 0
    %1903 = vmatpush1.bf16.msra.mxu0 0
    %1904 = vmatprep.subr.bf16.mxu0 0
    %1905 = vmatpush1.bf16.msra.mxu0 0
    %1906 = vmatprep.mubr.bf16.mxu0 0
    %1907 = vmatmul.mubr.bf16.gmra.mrb[0].mxu0 %v1869
    %v1908 = vpop.f32.mrb[0].mxu0
    %v1909 = vadd.f32 0.0, %v1908
    %v1910 = vpop.f32.mrb[0].mxu0
    %v1911 = vpop.f32.mrb[0].mxu0
    %v1912 = vadd.f32 0.0, %v1911
    %v1913 = vpop.f32.mrb[0].mxu0
    %1914 = vdwg.mxu0
    %v1915 = vadd.f32 %v1449, %v1909
    %v1916 = vadd.f32 %v1450, %v1912
    %v1917 = vadd.f32 %v34, %v1915
    %v1918 = vadd.f32 %v35, %v1916
    %v1919 = vsel %vm70, %v1917, 0.0
    %1920 = vadd.xlane.f32.xlu0 %v1919
    %v1921 = vpop.xlane.xlu0 %1920
    %v1922 = vsel %vm70, %v1918, 0.0
    %1923 = vadd.xlane.f32.xlu0 %v1922
    %v1924 = vpop.xlane.xlu0 %1923
    %v1925 = vrcp.pop 32.0
    %v1926 = vmul.f32 %v1921, %v1925
    %v1927 = vmul.f32 %v1924, %v1925
    %v1928 = vsub.f32 %v1917, %v1926
    %v1929 = vsub.f32 %v1918, %v1927
    %v1930 = vmul.f32 %v1928, %v1928
    %v1931 = vmul.f32 %v1929, %v1929
    %v1932 = vsel %vm70, %v1930, 0.0
    %1933 = vadd.xlane.f32.xlu0 %v1932
    %v1934 = vpop.xlane.xlu0 %1933
    %v1935 = vsel %vm70, %v1931, 0.0
    %1936 = vadd.xlane.f32.xlu0 %v1935
    %v1937 = vpop.xlane.xlu0 %1936
    %v1938 = vmul.f32 %v1934, %v1925
    %v1939 = vmul.f32 %v1937, %v1925
    %v1940 = vadd.f32 %v1938, 1e-05
    %v1941 = vadd.f32 %v1939, 1e-05
    %v1942 = vrsqrt.pop %v1940
    %v1943 = vrsqrt.pop %v1941
    %v1944 = vmul.f32 %v1928, %v1942
    %v1945 = vmul.f32 %v1929, %v1943
    %v1946 = vlaneseq
    %v1947 = vshrl.u32 %v1946, 7
    %v1948 = vsub.s32 1, %v1947
    %v1949 = vrot.slane %v41, %v1948
    %v1950 = vmul.f32 %v1944, %v1949
    %v1951 = vmul.f32 %v1945, %v1949
    %v1952 = vlaneseq
    %v1953 = vshrl.u32 %v1952, 7
    %v1954 = vsub.s32 2, %v1953
    %v1955 = vrot.slane %v41, %v1954
    %v1956 = vadd.f32 %v1950, %v1955
    %v1957 = vadd.f32 %v1951, %v1955
    %v1958 = vpack.c.bf16 %v1957, %v1956
    %v1959 = vld [vmem:[%s5] sm:$0xf]
    %v1960 = vld [vmem:[%s5 + $0x4] sm:$0xf]
    %v1961 = vld [vmem:[%s5 + $0x8] sm:$0xf]
    %v1962 = vld [vmem:[%s5 + $0xc] sm:$0xf]
    %v1963 = vld [vmem:[%s6] sm:$0x1]
    %v1965 = vlaneseq
    %v1966 = vshrl.u32 %v1965, 7
    %v1967 = vsub.s32 0, %v1966
    %v1968 = vrot.slane %v1963, %v1967
    %v1974 = vunpack.c.l.b16 %v1959
    %v1975 = vunpack.c.l.b16 %v1960
    %v1976 = vunpack.c.l.b16 %v1961
    %v1977 = vunpack.c.l.b16 %v1962
    %v1978 = vpack.c.b16 %v1975, %v1974
    %v1979 = vpack.c.b16 %v1977, %v1976
    %v1983 = vsel %vm70, %v1958, 0
    %1985 = vmatprep.subr.bf16.mxu0 0
    %1986 = vmatpush1.bf16.msra.mxu0 %v1978
    %1987 = vmatprep.subr.bf16.mxu0 0
    %1988 = vmatpush1.bf16.msra.mxu0 %v1979
    %1989 = vmatprep.subr.bf16.mxu0 0
    %1990 = vmatpush1.bf16.msra.mxu0 0
    %1991 = vmatprep.subr.bf16.mxu0 0
    %1992 = vmatpush1.bf16.msra.mxu0 0
    %1993 = vmatprep.subr.bf16.mxu0 0
    %1994 = vmatpush1.bf16.msra.mxu0 0
    %1995 = vmatprep.subr.bf16.mxu0 0
    %1996 = vmatpush1.bf16.msra.mxu0 0
    %1997 = vmatprep.subr.bf16.mxu0 0
    %1998 = vmatpush1.bf16.msra.mxu0 0
    %1999 = vmatprep.subr.bf16.mxu0 0
    %2000 = vmatpush1.bf16.msra.mxu0 0
    %2001 = vmatprep.subr.bf16.mxu0 0
    %2002 = vmatpush1.bf16.msra.mxu0 0
    %2003 = vmatprep.subr.bf16.mxu0 0
    %2004 = vmatpush1.bf16.msra.mxu0 0
    %2005 = vmatprep.subr.bf16.mxu0 0
    %2006 = vmatpush1.bf16.msra.mxu0 0
    %2007 = vmatprep.subr.bf16.mxu0 0
    %2008 = vmatpush1.bf16.msra.mxu0 0
    %2009 = vmatprep.subr.bf16.mxu0 0
    %2010 = vmatpush1.bf16.msra.mxu0 0
    %2011 = vmatprep.subr.bf16.mxu0 0
    %2012 = vmatpush1.bf16.msra.mxu0 0
    %2013 = vmatprep.subr.bf16.mxu0 0
    %2014 = vmatpush1.bf16.msra.mxu0 0
    %2015 = vmatprep.subr.bf16.mxu0 0
    %2016 = vmatpush1.bf16.msra.mxu0 0
    %2017 = vmatprep.mubr.bf16.mxu0 0
    %2018 = vmatmul.mubr.bf16.gmra.mrb[0].mxu0 %v1983
    %v2019 = vpop.f32.mrb[0].mxu0
    %v2020 = vadd.f32 %v1968, %v2019
    %v2021 = vpop.f32.mrb[0].mxu0
    %v2022 = vpop.f32.mrb[0].mxu0
    %v2023 = vadd.f32 %v1968, %v2022
    %v2024 = vpop.f32.mrb[0].mxu0
    %2025 = vdwg.mxu0
    %v2026 = vmax.f32 %v2020, 0.0
    %v2027 = vmax.f32 %v2023, 0.0
    %v2028 = vpack.c.bf16 %v2027, %v2026
    %v2029 = vld [vmem:[%s7] sm:$0xf]
    %v2030 = vld [vmem:[%s7 + $0x4] sm:$0xf]
    %v2031 = vld [vmem:[%s7 + $0x8] sm:$0xf]
    %v2032 = vld [vmem:[%s7 + $0xc] sm:$0xf]
    %v2033 = vld [vmem:[%s7 + $0x10] sm:$0xf]
    %v2034 = vld [vmem:[%s7 + $0x14] sm:$0xf]
    %v2035 = vld [vmem:[%s7 + $0x18] sm:$0xf]
    %v2036 = vld [vmem:[%s7 + $0x1c] sm:$0xf]
    %v2037 = vlaneseq
    %v2038 = vshrl.u32 %v2037, 7
    %v2039 = vsub.s32 3, %v2038
    %v2040 = vrot.slane %v41, %v2039
    %v2049 = vunpack.c.l.b16 %v2029
    %v2050 = vunpack.c.l.b16 %v2030
    %v2051 = vunpack.c.l.b16 %v2031
    %v2052 = vunpack.c.l.b16 %v2032
    %v2053 = vunpack.c.l.b16 %v2033
    %v2054 = vunpack.c.l.b16 %v2034
    %v2055 = vunpack.c.l.b16 %v2035
    %v2056 = vunpack.c.l.b16 %v2036
    %v2057 = vpack.c.b16 %v2050, %v2049
    %v2058 = vpack.c.b16 %v2052, %v2051
    %v2059 = vpack.c.b16 %v2054, %v2053
    %v2060 = vpack.c.b16 %v2056, %v2055
    %vm2065 = vcmask 523264
    %v2067 = vsel %vm2065, %v2028, 0
    %2069 = vmatprep.subr.bf16.mxu0 0
    %2070 = vmatpush1.bf16.msra.mxu0 %v2057
    %2071 = vmatprep.subr.bf16.mxu0 0
    %2072 = vmatpush1.bf16.msra.mxu0 %v2058
    %2073 = vmatprep.subr.bf16.mxu0 0
    %2074 = vmatpush1.bf16.msra.mxu0 %v2059
    %2075 = vmatprep.subr.bf16.mxu0 0
    %2076 = vmatpush1.bf16.msra.mxu0 %v2060
    %2077 = vmatprep.subr.bf16.mxu0 0
    %2078 = vmatpush1.bf16.msra.mxu0 0
    %2079 = vmatprep.subr.bf16.mxu0 0
    %2080 = vmatpush1.bf16.msra.mxu0 0
    %2081 = vmatprep.subr.bf16.mxu0 0
    %2082 = vmatpush1.bf16.msra.mxu0 0
    %2083 = vmatprep.subr.bf16.mxu0 0
    %2084 = vmatpush1.bf16.msra.mxu0 0
    %2085 = vmatprep.subr.bf16.mxu0 0
    %2086 = vmatpush1.bf16.msra.mxu0 0
    %2087 = vmatprep.subr.bf16.mxu0 0
    %2088 = vmatpush1.bf16.msra.mxu0 0
    %2089 = vmatprep.subr.bf16.mxu0 0
    %2090 = vmatpush1.bf16.msra.mxu0 0
    %2091 = vmatprep.subr.bf16.mxu0 0
    %2092 = vmatpush1.bf16.msra.mxu0 0
    %2093 = vmatprep.subr.bf16.mxu0 0
    %2094 = vmatpush1.bf16.msra.mxu0 0
    %2095 = vmatprep.subr.bf16.mxu0 0
    %2096 = vmatpush1.bf16.msra.mxu0 0
    %2097 = vmatprep.subr.bf16.mxu0 0
    %2098 = vmatpush1.bf16.msra.mxu0 0
    %2099 = vmatprep.subr.bf16.mxu0 0
    %2100 = vmatpush1.bf16.msra.mxu0 0
    %2101 = vmatprep.mubr.bf16.mxu0 0
    %2102 = vmatmul.mubr.bf16.gmra.mrb[0].mxu0 %v2067
    %v2103 = vpop.f32.mrb[0].mxu0
    %v2104 = vadd.f32 %v2040, %v2103
    %v2105 = vpop.f32.mrb[0].mxu0
    %v2106 = vpop.f32.mrb[0].mxu0
    %v2107 = vadd.f32 %v2040, %v2106
    %v2108 = vpop.f32.mrb[0].mxu0
    %2109 = vdwg.mxu0
    %v2110 = vadd.f32 %v2104, %v1956
    %v2111 = vadd.f32 %v2107, %v1957
    %v2112 = vsel %vm70, %v2110, 0.0
    %2113 = vadd.xlane.f32.xlu0 %v2112
    %v2114 = vpop.xlane.xlu0 %2113
    %v2115 = vsel %vm70, %v2111, 0.0
    %2116 = vadd.xlane.f32.xlu0 %v2115
    %v2117 = vpop.xlane.xlu0 %2116
    %v2118 = vmul.f32 %v2114, %v1925
    %v2119 = vmul.f32 %v2117, %v1925
    %v2120 = vsub.f32 %v2110, %v2118
    %v2121 = vsub.f32 %v2111, %v2119
    %v2122 = vmul.f32 %v2120, %v2120
    %v2123 = vmul.f32 %v2121, %v2121
    %v2124 = vsel %vm70, %v2122, 0.0
    %2125 = vadd.xlane.f32.xlu0 %v2124
    %v2126 = vpop.xlane.xlu0 %2125
    %v2127 = vsel %vm70, %v2123, 0.0
    %2128 = vadd.xlane.f32.xlu0 %v2127
    %v2129 = vpop.xlane.xlu0 %2128
    %v2130 = vmul.f32 %v2126, %v1925
    %v2131 = vmul.f32 %v2129, %v1925
    %v2132 = vadd.f32 %v2130, 1e-05
    %v2133 = vadd.f32 %v2131, 1e-05
    %v2134 = vrsqrt.pop %v2132
    %v2135 = vrsqrt.pop %v2133
    %v2136 = vmul.f32 %v2120, %v2134
    %v2137 = vmul.f32 %v2121, %v2135
    %v2138 = vlaneseq
    %v2139 = vshrl.u32 %v2138, 7
    %v2140 = vsub.s32 4, %v2139
    %v2141 = vrot.slane %v41, %v2140
    %v2142 = vmul.f32 %v2136, %v2141
    %v2143 = vmul.f32 %v2137, %v2141
    %v2144 = vlaneseq
    %v2145 = vshrl.u32 %v2144, 7
    %v2146 = vsub.s32 5, %v2145
    %v2147 = vrot.slane %v41, %v2146
    %v2148 = vadd.f32 %v2142, %v2147
    %v2149 = vadd.f32 %v2143, %v2147
    %2150 = vst.msk [vmem:[#allocation2] sm:$0xff] %vm70, %v2148
    %2151 = vst.msk [vmem:[#allocation2 + $0x8] sm:$0xff] %vm70, %v2149
    // Predicated region
    $region38: #{tpu_custom_call.1} parent=1 // pred_check
      _
    $region39: #{tpu_custom_call.1} parent=1 // pred_check_branch
      %2153 = sbr.rel (0) target = $region41
    $region40: #{tpu_custom_call.1} parent=1 // pred_region
      %s2155 = ssub.s32 256, 256
      %2156 = vsyncadd [#allocation3], %s2155
      %s2157 = sshll.u32 [#allocation2], 4
      %s2158 = int_to_ptr.vmem [resolvable:$true] %s2157
      %2163 = dma.vmem_to_hbm [thread:$0]  %s2158, 256, %s9, [#allocation3], 128, 128, 8
    $region41: #{tpu_custom_call.1} parent=1 // pred_fallthru
      _
    // Predicated region
    $region42: #{tpu_custom_call.1} parent=1 // pred_check
      _
    $region43: #{tpu_custom_call.1} parent=1 // pred_check_branch
      %2165 = sbr.rel (0) target = $region45
    $region44: #{tpu_custom_call.1} parent=1 // pred_region
      %2166 = dma.done [#allocation3], 256
    $region45: #{tpu_custom_call.1} parent=1 // pred_fallthru
      _
    %2167 = vsyncpa [#allocation3], 1

</llo_original>
